<compile_context>
chip_gen: v7x
topology: tpu7x:2x2x1
jax: 0.10.0
libtpu: 0.0.40
codegen_flags: <defaults>
</compile_context>

<pallas_src>
import functools

import jax
import jax.numpy as jnp
from jax.experimental import pallas as pl
from jax.experimental.pallas import tpu as pltpu

# ---- small synthetic ViT config (stands in for vit_base_patch16_224) ----
PATCH = 8
IMG = 16
IN_CH = 3
EMBED = 32                    # feat_dim
DEPTH = 2
HEADS = 4
HEAD_DIM = EMBED // HEADS
MLP_HIDDEN = 4 * EMBED
LN_EPS = 1e-6
NUM_PATCHES = (IMG // PATCH) ** 2
NUM_TOKENS = NUM_PATCHES + 1
K_IN = IN_CH * PATCH * PATCH          # conv-as-matmul contraction size
K_PAD = ((K_IN + 1 + 127) // 128) * 128   # +1 cls-selector column, lane aligned

# TODO(synk): pretrained timm checkpoint loading has no Pallas equivalent;
# weights are initialized deterministically in-script instead.


def _ln(x, g, b):
    mu = jnp.mean(x, axis=-1, keepdims=True)
    xc = x - mu
    var = jnp.mean(xc * xc, axis=-1, keepdims=True)
    return xc * jax.lax.rsqrt(var + LN_EPS) * g + b


def _gelu(x):
    # exact (erf-based) GELU, matching torch.nn.GELU() default
    return 0.5 * x * (1.0 + jax.lax.erf(x * 0.7071067811865476))


# ----------------------- fused full-encoder kernel -------------------------

def _encoder_kernel(xa_ref, add_ref, img_bias_ref, patch_w_ref,
                    ln1_g, ln1_b, qkv_w, qkv_b, proj_w, proj_b,
                    ln2_g, ln2_b, fc1_w, fc1_b, fc2_w, fc2_b,
                    norm_g, norm_b,
                    o_ref, h_scr, *, heads, head_dim):
    f32, bf16 = jnp.float32, jnp.bfloat16
    D = heads * head_dim
    d = pl.program_id(1)

    # ---- d == 0: fused patch embed + cls token + pos embed (one MXU matmul) ----
    @pl.when(d == 0)
    def _():
        tok = jnp.dot(xa_ref[...], patch_w_ref[...],
                      preferred_element_type=f32)            # (BTN, D)
        h_scr[...] = tok + add_ref[...]

    h = h_scr[...]                                           # f32 residual stream

    # ---- attention sublayer: LN1 -> qkv -> per-head block-diag attn -> proj ----
    y = _ln(h, ln1_g[...], ln1_b[...])
    qkv = jnp.dot(y.astype(bf16), qkv_w[...],
                  preferred_element_type=f32) + qkv_b[...]   # (BTN, 3D)
    q = qkv[:, :D].astype(bf16)
    k = qkv[:, D:2 * D].astype(bf16)
    v = qkv[:, 2 * D:].astype(bf16)
    img_bias = img_bias_ref[...]                             # (BTN, BTN) 0 / -1e30

    head_outs = []
    for hh in range(heads):                                  # small static loop
        sl = slice(hh * head_dim, (hh + 1) * head_dim)
        # scores over the whole image tile at once; cross-image blocks masked.
        # 1/sqrt(head_dim) is pre-folded into the q weights/bias.
        s = jax.lax.dot_general(q[:, sl], k[:, sl], (((1,), (1,)), ((), ())),
                                preferred_element_type=f32)  # (BTN, BTN)
        s = s + img_bias
        s = s - jnp.max(s, axis=-1, keepdims=True)
        p = jnp.exp(s)
        l = jnp.sum(p, axis=-1, keepdims=True)
        oh = jnp.dot(p.astype(bf16), v[:, sl], preferred_element_type=f32)
        head_outs.append(oh * pl.reciprocal(l, approx=True))
    attn = jnp.concatenate(head_outs, axis=-1)               # (BTN, D) concat heads
    attn = jnp.dot(attn.astype(bf16), proj_w[...],
                   preferred_element_type=f32) + proj_b[...]
    h = h + attn

    # ---- MLP sublayer: LN2 -> fc1 + GELU -> fc2 ----
    y = _ln(h, ln2_g[...], ln2_b[...])
    y = jnp.dot(y.astype(bf16), fc1_w[...],
                preferred_element_type=f32) + fc1_b[...]
    y = _gelu(y)
    y = jnp.dot(y.astype(bf16), fc2_w[...],
                preferred_element_type=f32) + fc2_b[...]
    h = h + y
    h_scr[...] = h                                           # stays in VMEM

    # ---- last layer: final encoder LayerNorm + single HBM writeback ----
    @pl.when(d == pl.num_programs(1) - 1)
    def _():
        o_ref[...] = _ln(h, norm_g[...], norm_b[...]).astype(o_ref.dtype)


def vit_encoder(xa, add_term, img_bias, params, *, b_tile, n_tokens):
    num_tiles = xa.shape[0]
    btn = b_tile * n_tokens
    kernel = functools.partial(_encoder_kernel, heads=HEADS, head_dim=HEAD_DIM)

    def batch_spec(arr):   # tiled over batch, constant across depth (DMA'd once)
        return pl.BlockSpec((None,) + arr.shape[1:], lambda b, d: (b, 0, 0))

    def layer_spec(arr):   # per-depth stacked weights, selected by the index_map
        return pl.BlockSpec((None,) + arr.shape[1:], lambda b, d: (d, 0, 0))

    def const_spec(arr):
        return pl.BlockSpec(arr.shape, lambda b, d: (0,) * arr.ndim)

    weight_keys = ["ln1_g", "ln1_b", "qkv_w", "qkv_b", "proj_w", "proj_b",
                   "ln2_g", "ln2_b", "fc1_w", "fc1_b", "fc2_w", "fc2_b"]
    layer_ws = [params[kk] for kk in weight_keys]

    in_specs = ([batch_spec(xa), batch_spec(add_term), const_spec(img_bias),
                 const_spec(params["patch_w_aug"])]
                + [layer_spec(w) for w in layer_ws]
                + [const_spec(params["norm_g"]), const_spec(params["norm_b"])])

    return pl.pallas_call(
        kernel,
        grid=(num_tiles, DEPTH),
        in_specs=in_specs,
        out_specs=pl.BlockSpec((None, btn, EMBED), lambda b, d: (b, 0, 0)),
        out_shape=jax.ShapeDtypeStruct((num_tiles, btn, EMBED), jnp.float32),
        scratch_shapes=[pltpu.VMEM((btn, EMBED), jnp.float32)],
        compiler_params=pltpu.CompilerParams(
            dimension_semantics=("parallel", "arbitrary")),
    )(xa, add_term, img_bias, params["patch_w_aug"], *layer_ws,
      params["norm_g"], params["norm_b"])


# ------------------------------ parameters --------------------------------

def init_params(key):
    def nrm(k, shape, std=0.02):
        return (std * jax.random.normal(k, shape)).astype(jnp.float32)

    keys = jax.random.split(key, 4 + DEPTH)
    params = {
        "patch_w": nrm(keys[0], (K_IN, EMBED)),
        "patch_b": jnp.zeros((EMBED,), jnp.float32),
        "cls_token": nrm(keys[1], (1, 1, EMBED)),
        "pos_embed": nrm(keys[2], (1, NUM_TOKENS, EMBED)),
        "norm_g": jnp.ones((EMBED,), jnp.float32),
        "norm_b": jnp.zeros((EMBED,), jnp.float32),
        "blocks": [],
    }
    for d in range(DEPTH):
        bkeys = jax.random.split(keys[4 + d], 4)
        params["blocks"].append({
            "ln1_g": jnp.ones((EMBED,), jnp.float32),
            "ln1_b": jnp.zeros((EMBED,), jnp.float32),
            "qkv_w": nrm(bkeys[0], (EMBED, 3 * EMBED)),
            "qkv_b": jnp.zeros((3 * EMBED,), jnp.float32),
            "proj_w": nrm(bkeys[1], (EMBED, EMBED)),
            "proj_b": jnp.zeros((EMBED,), jnp.float32),
            "ln2_g": jnp.ones((EMBED,), jnp.float32),
            "ln2_b": jnp.zeros((EMBED,), jnp.float32),
            "fc1_w": nrm(bkeys[2], (EMBED, MLP_HIDDEN)),
            "fc1_b": jnp.zeros((MLP_HIDDEN,), jnp.float32),
            "fc2_w": nrm(bkeys[3], (MLP_HIDDEN, EMBED)),
            "fc2_b": jnp.zeros((EMBED,), jnp.float32),
        })
    return params


def prepare_params(params):
    """Stack per-layer weights along depth, fold the attention scale into the q
    columns of qkv (valid because qkv consumes the LN1 output), fold cls token /
    pos embed / patch bias into the augmented patch-embed matmul, cast matmul
    weights to bf16."""
    scale = float(HEAD_DIM) ** -0.5

    # augmented conv-as-matmul weight: rows [0:K_IN) = patch_w, row K_IN = cls.
    w_aug = jnp.zeros((K_PAD, EMBED), jnp.float32)
    w_aug = w_aug.at[:K_IN].set(params["patch_w"])
    w_aug = w_aug.at[K_IN].set(params["cls_token"].reshape(EMBED))

    # per-token additive term: pos_embed (+ patch bias for non-cls tokens).
    add_tok = params["pos_embed"].reshape(NUM_TOKENS, EMBED)
    add_tok = add_tok.at[1:].add(params["patch_b"])

    def stack(key_):
        return jnp.stack([blk[key_] for blk in params["blocks"]])

    def row(a):                      # (DEPTH, r) -> (DEPTH, 1, r)
        return a[:, None, :]

    qkv_w = stack("qkv_w").at[:, :, :EMBED].multiply(scale)
    qkv_b = stack("qkv_b").at[:, :EMBED].multiply(scale)
    return {
        "patch_w_aug": w_aug.astype(jnp.bfloat16),
        "add_tok": add_tok,
        "ln1_g": row(stack("ln1_g")), "ln1_b": row(stack("ln1_b")),
        "qkv_w": qkv_w.astype(jnp.bfloat16), "qkv_b": row(qkv_b),
        "proj_w": stack("proj_w").astype(jnp.bfloat16), "proj_b": row(stack("proj_b")),
        "ln2_g": row(stack("ln2_g")), "ln2_b": row(stack("ln2_b")),
        "fc1_w": stack("fc1_w").astype(jnp.bfloat16), "fc1_b": row(stack("fc1_b")),
        "fc2_w": stack("fc2_w").astype(jnp.bfloat16), "fc2_b": row(stack("fc2_b")),
        "norm_g": params["norm_g"].reshape(1, EMBED),
        "norm_b": params["norm_b"].reshape(1, EMBED),
    }


# ------------------------------ forward pass -------------------------------

def vision_transformer_backbone(x, params):
    """x: (BF, T, C, H, W) float32  ->  (BF, T, EMBED) float32."""
    BF, T, C, H, W = x.shape
    B = BF * T
    nH, nW = H // PATCH, W // PATCH
    num_patches = nH * nW
    n_tokens = num_patches + 1

    # two batch tiles -> both TensorCores get a "parallel" grid slot.
    b_tile = B // 2 if (B % 2 == 0 and B >= 2) else B
    num_tiles = B // b_tile
    btn = b_tile * n_tokens

    # ---- patch extraction in bf16 (halves rearrange bytes) + cls-selector row ----
    xb = x.reshape(B, C, H, W).astype(jnp.bfloat16)
    patches = xb.reshape(B, C, nH, PATCH, nW, PATCH).transpose(0, 2, 4, 1, 3, 5)
    patches = patches.reshape(B, num_patches, K_IN)
    patches = jnp.pad(patches, ((0, 0), (0, 0), (0, K_PAD - K_IN)))
    cls_sel = jnp.zeros((B, 1, K_PAD), jnp.bfloat16).at[:, :, K_IN].set(1.0)
    xa = jnp.concatenate([cls_sel, patches], axis=1)            # (B, N, K_PAD)
    xa = xa.reshape(num_tiles, btn, K_PAD)

    add_term = jnp.broadcast_to(params["add_tok"][None], (B, n_tokens, EMBED))
    add_term = add_term.reshape(num_tiles, btn, EMBED)

    # block-diagonal (per-image) additive attention bias for the flattened tile
    tok_img = jnp.arange(btn) // n_tokens
    img_bias = jnp.where(tok_img[:, None] == tok_img[None, :],
                         0.0, -1e30).astype(jnp.float32)

    out = vit_encoder(xa, add_term, img_bias, params,
                      b_tile=b_tile, n_tokens=n_tokens)
    feats = out.reshape(B, n_tokens, EMBED)[:, 0, :]            # cls pooling
    return feats.reshape(BF, T, EMBED)                          # '(bf t) d -> bf t d'


# ----------------------- pure-JAX reference (f32 math) ---------------------

def _reference_forward(x, params):
    BF, T, C, H, W = x.shape
    B = BF * T
    nH, nW = H // PATCH, W // PATCH
    num_patches = nH * nW
    n_tokens = num_patches + 1
    f32 = jnp.float32

    xb = x.reshape(B, C, H, W).astype(jnp.bfloat16).astype(f32)
    patches = xb.reshape(B, C, nH, PATCH, nW, PATCH).transpose(0, 2, 4, 1, 3, 5)
    patches = patches.reshape(B, num_patches, K_IN)

    w_aug = params["patch_w_aug"].astype(f32)
    tok = patches @ w_aug[:K_IN]
    cls = jnp.broadcast_to(w_aug[K_IN][None, None, :], (B, 1, EMBED))
    h = jnp.concatenate([cls, tok], axis=1) + params["add_tok"][None]

    for d in range(DEPTH):
        y = _ln(h, params["ln1_g"][d], params["ln1_b"][d])
        qkv = y @ params["qkv_w"][d].astype(f32) + params["qkv_b"][d]
        q, k, v = jnp.split(qkv, 3, axis=-1)

        def heads_(a):
            return a.reshape(B, n_tokens, HEADS, HEAD_DIM).transpose(0, 2, 1, 3)

        q, k, v = heads_(q), heads_(k), heads_(v)
        s = q @ jnp.swapaxes(k, -1, -2)        # scale pre-folded into q weights
        p = jax.nn.softmax(s, axis=-1)
        o = (p @ v).transpose(0, 2, 1, 3).reshape(B, n_tokens, EMBED)
        h = h + o @ params["proj_w"][d].astype(f32) + params["proj_b"][d]

        y = _ln(h, params["ln2_g"][d], params["ln2_b"][d])
        y = y @ params["fc1_w"][d].astype(f32) + params["fc1_b"][d]
        y = _gelu(y)
        y = y @ params["fc2_w"][d].astype(f32) + params["fc2_b"][d]
        h = h + y

    h = _ln(h, params["norm_g"], params["norm_b"])
    return h[:, 0, :].reshape(BF, T, EMBED)


if __name__ == "__main__":
    key = jax.random.PRNGKey(0)
    pkey, xkey = jax.random.split(key)
    params = prepare_params(init_params(pkey))

    BF, T = 2, 2
    x = jax.random.normal(xkey, (BF, T, IN_CH, IMG, IMG), dtype=jnp.float32)

    fwd = jax.jit(vision_transformer_backbone)
    out = fwd(x, params)
    jax.block_until_ready(out)
    assert out.shape == (BF, T, EMBED), out.shape
    assert out.dtype == jnp.float32

    ref = _reference_forward(x, params)
    assert bool(jnp.all(jnp.isfinite(out)))
    assert jnp.allclose(out, ref, rtol=5e-2, atol=5e-2), \
        float(jnp.max(jnp.abs(out - ref)))
    print("KERNEL_OK")
</pallas_src>

<mosaic_0001>
module attributes {stable_mosaic.version = 11 : i64} {
  func.func @_encoder_kernel(%arg0: i32, %arg1: i32, %arg2: memref<1x10x256xbf16, #tpu.memory_space<vmem>>, %arg3: memref<1x10x32xf32, #tpu.memory_space<vmem>>, %arg4: memref<10x10xf32, #tpu.memory_space<vmem>>, %arg5: memref<256x32xbf16, #tpu.memory_space<vmem>>, %arg6: memref<1x1x32xf32, #tpu.memory_space<vmem>>, %arg7: memref<1x1x32xf32, #tpu.memory_space<vmem>>, %arg8: memref<1x32x96xbf16, #tpu.memory_space<vmem>>, %arg9: memref<1x1x96xf32, #tpu.memory_space<vmem>>, %arg10: memref<1x32x32xbf16, #tpu.memory_space<vmem>>, %arg11: memref<1x1x32xf32, #tpu.memory_space<vmem>>, %arg12: memref<1x1x32xf32, #tpu.memory_space<vmem>>, %arg13: memref<1x1x32xf32, #tpu.memory_space<vmem>>, %arg14: memref<1x32x128xbf16, #tpu.memory_space<vmem>>, %arg15: memref<1x1x128xf32, #tpu.memory_space<vmem>>, %arg16: memref<1x128x32xbf16, #tpu.memory_space<vmem>>, %arg17: memref<1x1x32xf32, #tpu.memory_space<vmem>>, %arg18: memref<1x32xf32, #tpu.memory_space<vmem>>, %arg19: memref<1x32xf32, #tpu.memory_space<vmem>>, %arg20: memref<1x10x32xf32, #tpu.memory_space<vmem>>, %arg21: memref<10x32xf32, #tpu.memory_space<vmem>>) attributes {dimension_semantics = [#tpu.dimension_semantics<parallel>, #tpu.dimension_semantics<arbitrary>], iteration_bounds = array<i64: 2, 2>, scalar_prefetch = 0 : i64, scratch_operands = 1 : i64, tpu.core_type = #tpu.core_type<tc>, window_params = [{transform_indices = @transform_0, window_bounds = array<i64: 1, 10, 256>}, {transform_indices = @transform_1, window_bounds = array<i64: 1, 10, 32>}, {pipeline_mode = #tpu.pipeline_mode<synchronous>, transform_indices = @transform_2, window_bounds = array<i64: 10, 10>}, {pipeline_mode = #tpu.pipeline_mode<synchronous>, transform_indices = @transform_3, window_bounds = array<i64: 256, 32>}, {transform_indices = @transform_4, window_bounds = array<i64: 1, 1, 32>}, {transform_indices = @transform_5, window_bounds = array<i64: 1, 1, 32>}, {transform_indices = @transform_6, window_bounds = array<i64: 1, 32, 96>}, {transform_indices = @transform_7, window_bounds = array<i64: 1, 1, 96>}, {transform_indices = @transform_8, window_bounds = array<i64: 1, 32, 32>}, {transform_indices = @transform_9, window_bounds = array<i64: 1, 1, 32>}, {transform_indices = @transform_10, window_bounds = array<i64: 1, 1, 32>}, {transform_indices = @transform_11, window_bounds = array<i64: 1, 1, 32>}, {transform_indices = @transform_12, window_bounds = array<i64: 1, 32, 128>}, {transform_indices = @transform_13, window_bounds = array<i64: 1, 1, 128>}, {transform_indices = @transform_14, window_bounds = array<i64: 1, 128, 32>}, {transform_indices = @transform_15, window_bounds = array<i64: 1, 1, 32>}, {pipeline_mode = #tpu.pipeline_mode<synchronous>, transform_indices = @transform_16, window_bounds = array<i64: 1, 32>}, {pipeline_mode = #tpu.pipeline_mode<synchronous>, transform_indices = @transform_17, window_bounds = array<i64: 1, 32>}, {transform_indices = @transform_18, window_bounds = array<i64: 1, 10, 32>}]} {
    %c0_i32 = arith.constant 0 : i32
    %0 = arith.cmpi eq, %arg1, %c0_i32 : i32
    %1 = arith.extui %0 : i1 to i32
    %c0_i32_0 = arith.constant 0 : i32
    %2 = arith.cmpi ne, %1, %c0_i32_0 : i32
    scf.if %2 {
      %c0_75 = arith.constant 0 : index
      %c0_76 = arith.constant 0 : index
      %c0_77 = arith.constant 0 : index
      %174 = vector.load %arg2[%c0_75, %c0_76, %c0_77] : memref<1x10x256xbf16, #tpu.memory_space<vmem>>, vector<1x10x256xbf16>
      %175 = vector.shape_cast %174 : vector<1x10x256xbf16> to vector<10x256xbf16>
      %c0_78 = arith.constant 0 : index
      %c0_79 = arith.constant 0 : index
      %176 = vector.load %arg5[%c0_78, %c0_79] : memref<256x32xbf16, #tpu.memory_space<vmem>>, vector<256x32xbf16>
      %cst_80 = arith.constant dense<0.000000e+00> : vector<10x32xf32>
      %177 = tpu.matmul %175, %176, %cst_80 {dimension_numbers = #tpu.dot_dimension_numbers<[1], [0], [0], [1], [0, 0, 1, 1], [], []>} : vector<10x256xbf16>, vector<256x32xbf16>, vector<10x32xf32> -> vector<10x32xf32>
      %c0_81 = arith.constant 0 : index
      %c0_82 = arith.constant 0 : index
      %c0_83 = arith.constant 0 : index
      %178 = vector.load %arg3[%c0_81, %c0_82, %c0_83] : memref<1x10x32xf32, #tpu.memory_space<vmem>>, vector<1x10x32xf32>
      %179 = vector.shape_cast %178 : vector<1x10x32xf32> to vector<10x32xf32>
      %180 = arith.addf %177, %179 : vector<10x32xf32>
      %c0_84 = arith.constant 0 : index
      %c0_85 = arith.constant 0 : index
      %181 = vector.load %arg21[%c0_84, %c0_85] : memref<10x32xf32, #tpu.memory_space<vmem>>, vector<10x32xf32>
      tpu.vector_store %arg21[%c0_84, %c0_85], %180 {strides = array<i32>} : memref<10x32xf32, #tpu.memory_space<vmem>>, vector<10x32xf32>,
    } else {
    }
    %c0 = arith.constant 0 : index
    %c0_1 = arith.constant 0 : index
    %3 = vector.load %arg21[%c0, %c0_1] : memref<10x32xf32, #tpu.memory_space<vmem>>, vector<10x32xf32>
    %c0_2 = arith.constant 0 : index
    %c0_3 = arith.constant 0 : index
    %c0_4 = arith.constant 0 : index
    %4 = vector.load %arg6[%c0_2, %c0_3, %c0_4] : memref<1x1x32xf32, #tpu.memory_space<vmem>>, vector<1x1x32xf32>
    %5 = vector.shape_cast %4 : vector<1x1x32xf32> to vector<1x32xf32>
    %c0_5 = arith.constant 0 : index
    %c0_6 = arith.constant 0 : index
    %c0_7 = arith.constant 0 : index
    %6 = vector.load %arg7[%c0_5, %c0_6, %c0_7] : memref<1x1x32xf32, #tpu.memory_space<vmem>>, vector<1x1x32xf32>
    %7 = vector.shape_cast %6 : vector<1x1x32xf32> to vector<1x32xf32>
    %cst = arith.constant dense<0.000000e+00> : vector<10xf32>
    %8 = vector.multi_reduction <add>, %3, %cst [1] : vector<10x32xf32> to vector<10xf32>
    %9 = vector.shape_cast %8 : vector<10xf32> to vector<10x1xf32>
    %cst_8 = arith.constant 3.200000e+01 : f32
    %10 = vector.broadcast %cst_8 : f32 to vector<10x1xf32>
    %11 = arith.divf %9, %10 : vector<10x1xf32>
    %12 = vector.broadcast %11 : vector<10x1xf32> to vector<10x32xf32>
    %13 = arith.subf %3, %12 : vector<10x32xf32>
    %14 = arith.mulf %13, %13 : vector<10x32xf32>
    %cst_9 = arith.constant dense<0.000000e+00> : vector<10xf32>
    %15 = vector.multi_reduction <add>, %14, %cst_9 [1] : vector<10x32xf32> to vector<10xf32>
    %16 = vector.shape_cast %15 : vector<10xf32> to vector<10x1xf32>
    %cst_10 = arith.constant 3.200000e+01 : f32
    %17 = vector.broadcast %cst_10 : f32 to vector<10x1xf32>
    %18 = arith.divf %16, %17 : vector<10x1xf32>
    %cst_11 = arith.constant 9.99999997E-7 : f32
    %19 = vector.broadcast %cst_11 : f32 to vector<10x1xf32>
    %20 = arith.addf %18, %19 : vector<10x1xf32>
    %21 = math.rsqrt %20 : vector<10x1xf32>
    %22 = vector.broadcast %21 : vector<10x1xf32> to vector<10x32xf32>
    %23 = arith.mulf %13, %22 : vector<10x32xf32>
    %24 = vector.broadcast %5 : vector<1x32xf32> to vector<10x32xf32>
    %25 = arith.mulf %23, %24 : vector<10x32xf32>
    %26 = vector.broadcast %7 : vector<1x32xf32> to vector<10x32xf32>
    %27 = arith.addf %25, %26 : vector<10x32xf32>
    %28 = arith.truncf %27 : vector<10x32xf32> to vector<10x32xbf16>
    %c0_12 = arith.constant 0 : index
    %c0_13 = arith.constant 0 : index
    %c0_14 = arith.constant 0 : index
    %29 = vector.load %arg8[%c0_12, %c0_13, %c0_14] : memref<1x32x96xbf16, #tpu.memory_space<vmem>>, vector<1x32x96xbf16>
    %30 = vector.shape_cast %29 : vector<1x32x96xbf16> to vector<32x96xbf16>
    %cst_15 = arith.constant dense<0.000000e+00> : vector<10x96xf32>
    %31 = tpu.matmul %28, %30, %cst_15 {dimension_numbers = #tpu.dot_dimension_numbers<[1], [0], [0], [1], [0, 0, 1, 1], [], []>} : vector<10x32xbf16>, vector<32x96xbf16>, vector<10x96xf32> -> vector<10x96xf32>
    %c0_16 = arith.constant 0 : index
    %c0_17 = arith.constant 0 : index
    %c0_18 = arith.constant 0 : index
    %32 = vector.load %arg9[%c0_16, %c0_17, %c0_18] : memref<1x1x96xf32, #tpu.memory_space<vmem>>, vector<1x1x96xf32>
    %33 = vector.shape_cast %32 : vector<1x1x96xf32> to vector<1x96xf32>
    %34 = vector.broadcast %33 : vector<1x96xf32> to vector<10x96xf32>
    %35 = arith.addf %31, %34 : vector<10x96xf32>
    %36 = vector.extract_strided_slice %35 {offsets = [0, 0], sizes = [10, 32], strides = [1, 1]} : vector<10x96xf32> to vector<10x32xf32>
    %37 = arith.truncf %36 : vector<10x32xf32> to vector<10x32xbf16>
    %38 = vector.extract_strided_slice %35 {offsets = [0, 32], sizes = [10, 32], strides = [1, 1]} : vector<10x96xf32> to vector<10x32xf32>
    %39 = arith.truncf %38 : vector<10x32xf32> to vector<10x32xbf16>
    %40 = vector.extract_strided_slice %35 {offsets = [0, 64], sizes = [10, 32], strides = [1, 1]} : vector<10x96xf32> to vector<10x32xf32>
    %41 = arith.truncf %40 : vector<10x32xf32> to vector<10x32xbf16>
    %c0_19 = arith.constant 0 : index
    %c0_20 = arith.constant 0 : index
    %42 = vector.load %arg4[%c0_19, %c0_20] : memref<10x10xf32, #tpu.memory_space<vmem>>, vector<10x10xf32>
    %43 = vector.extract_strided_slice %37 {offsets = [0, 0], sizes = [10, 8], strides = [1, 1]} : vector<10x32xbf16> to vector<10x8xbf16>
    %44 = vector.extract_strided_slice %39 {offsets = [0, 0], sizes = [10, 8], strides = [1, 1]} : vector<10x32xbf16> to vector<10x8xbf16>
    %cst_21 = arith.constant dense<0.000000e+00> : vector<10x10xf32>
    %45 = tpu.matmul %43, %44, %cst_21 {dimension_numbers = #tpu.dot_dimension_numbers<[1], [1], [0], [0], [0, 0, 1, 0], [], []>} : vector<10x8xbf16>, vector<10x8xbf16>, vector<10x10xf32> -> vector<10x10xf32>
    %46 = arith.addf %45, %42 : vector<10x10xf32>
    %cst_22 = arith.constant dense<0xFF800000> : vector<10xf32>
    %47 = vector.multi_reduction <maximumf>, %46, %cst_22 [1] : vector<10x10xf32> to vector<10xf32>
    %48 = vector.shape_cast %47 : vector<10xf32> to vector<10x1xf32>
    %49 = vector.broadcast %48 : vector<10x1xf32> to vector<10x10xf32>
    %50 = arith.subf %46, %49 : vector<10x10xf32>
    %51 = math.exp %50 : vector<10x10xf32>
    %cst_23 = arith.constant dense<0.000000e+00> : vector<10xf32>
    %52 = vector.multi_reduction <add>, %51, %cst_23 [1] : vector<10x10xf32> to vector<10xf32>
    %53 = vector.shape_cast %52 : vector<10xf32> to vector<10x1xf32>
    %54 = arith.truncf %51 : vector<10x10xf32> to vector<10x10xbf16>
    %55 = vector.extract_strided_slice %41 {offsets = [0, 0], sizes = [10, 8], strides = [1, 1]} : vector<10x32xbf16> to vector<10x8xbf16>
    %cst_24 = arith.constant dense<0.000000e+00> : vector<10x8xf32>
    %56 = tpu.matmul %54, %55, %cst_24 {dimension_numbers = #tpu.dot_dimension_numbers<[1], [0], [0], [1], [0, 0, 1, 1], [], []>} : vector<10x10xbf16>, vector<10x8xbf16>, vector<10x8xf32> -> vector<10x8xf32>
    %57 = tpu.reciprocal %53 {approx = true} : vector<10x1xf32> -> vector<10x1xf32>
    %58 = vector.broadcast %57 : vector<10x1xf32> to vector<10x8xf32>
    %59 = arith.mulf %56, %58 : vector<10x8xf32>
    %60 = vector.extract_strided_slice %37 {offsets = [0, 8], sizes = [10, 8], strides = [1, 1]} : vector<10x32xbf16> to vector<10x8xbf16>
    %61 = vector.extract_strided_slice %39 {offsets = [0, 8], sizes = [10, 8], strides = [1, 1]} : vector<10x32xbf16> to vector<10x8xbf16>
    %cst_25 = arith.constant dense<0.000000e+00> : vector<10x10xf32>
    %62 = tpu.matmul %60, %61, %cst_25 {dimension_numbers = #tpu.dot_dimension_numbers<[1], [1], [0], [0], [0, 0, 1, 0], [], []>} : vector<10x8xbf16>, vector<10x8xbf16>, vector<10x10xf32> -> vector<10x10xf32>
    %63 = arith.addf %62, %42 : vector<10x10xf32>
    %cst_26 = arith.constant dense<0xFF800000> : vector<10xf32>
    %64 = vector.multi_reduction <maximumf>, %63, %cst_26 [1] : vector<10x10xf32> to vector<10xf32>
    %65 = vector.shape_cast %64 : vector<10xf32> to vector<10x1xf32>
    %66 = vector.broadcast %65 : vector<10x1xf32> to vector<10x10xf32>
    %67 = arith.subf %63, %66 : vector<10x10xf32>
    %68 = math.exp %67 : vector<10x10xf32>
    %cst_27 = arith.constant dense<0.000000e+00> : vector<10xf32>
    %69 = vector.multi_reduction <add>, %68, %cst_27 [1] : vector<10x10xf32> to vector<10xf32>
    %70 = vector.shape_cast %69 : vector<10xf32> to vector<10x1xf32>
    %71 = arith.truncf %68 : vector<10x10xf32> to vector<10x10xbf16>
    %72 = vector.extract_strided_slice %41 {offsets = [0, 8], sizes = [10, 8], strides = [1, 1]} : vector<10x32xbf16> to vector<10x8xbf16>
    %cst_28 = arith.constant dense<0.000000e+00> : vector<10x8xf32>
    %73 = tpu.matmul %71, %72, %cst_28 {dimension_numbers = #tpu.dot_dimension_numbers<[1], [0], [0], [1], [0, 0, 1, 1], [], []>} : vector<10x10xbf16>, vector<10x8xbf16>, vector<10x8xf32> -> vector<10x8xf32>
    %74 = tpu.reciprocal %70 {approx = true} : vector<10x1xf32> -> vector<10x1xf32>
    %75 = vector.broadcast %74 : vector<10x1xf32> to vector<10x8xf32>
    %76 = arith.mulf %73, %75 : vector<10x8xf32>
    %77 = vector.extract_strided_slice %37 {offsets = [0, 16], sizes = [10, 8], strides = [1, 1]} : vector<10x32xbf16> to vector<10x8xbf16>
    %78 = vector.extract_strided_slice %39 {offsets = [0, 16], sizes = [10, 8], strides = [1, 1]} : vector<10x32xbf16> to vector<10x8xbf16>
    %cst_29 = arith.constant dense<0.000000e+00> : vector<10x10xf32>
    %79 = tpu.matmul %77, %78, %cst_29 {dimension_numbers = #tpu.dot_dimension_numbers<[1], [1], [0], [0], [0, 0, 1, 0], [], []>} : vector<10x8xbf16>, vector<10x8xbf16>, vector<10x10xf32> -> vector<10x10xf32>
    %80 = arith.addf %79, %42 : vector<10x10xf32>
    %cst_30 = arith.constant dense<0xFF800000> : vector<10xf32>
    %81 = vector.multi_reduction <maximumf>, %80, %cst_30 [1] : vector<10x10xf32> to vector<10xf32>
    %82 = vector.shape_cast %81 : vector<10xf32> to vector<10x1xf32>
    %83 = vector.broadcast %82 : vector<10x1xf32> to vector<10x10xf32>
    %84 = arith.subf %80, %83 : vector<10x10xf32>
    %85 = math.exp %84 : vector<10x10xf32>
    %cst_31 = arith.constant dense<0.000000e+00> : vector<10xf32>
    %86 = vector.multi_reduction <add>, %85, %cst_31 [1] : vector<10x10xf32> to vector<10xf32>
    %87 = vector.shape_cast %86 : vector<10xf32> to vector<10x1xf32>
    %88 = arith.truncf %85 : vector<10x10xf32> to vector<10x10xbf16>
    %89 = vector.extract_strided_slice %41 {offsets = [0, 16], sizes = [10, 8], strides = [1, 1]} : vector<10x32xbf16> to vector<10x8xbf16>
    %cst_32 = arith.constant dense<0.000000e+00> : vector<10x8xf32>
    %90 = tpu.matmul %88, %89, %cst_32 {dimension_numbers = #tpu.dot_dimension_numbers<[1], [0], [0], [1], [0, 0, 1, 1], [], []>} : vector<10x10xbf16>, vector<10x8xbf16>, vector<10x8xf32> -> vector<10x8xf32>
    %91 = tpu.reciprocal %87 {approx = true} : vector<10x1xf32> -> vector<10x1xf32>
    %92 = vector.broadcast %91 : vector<10x1xf32> to vector<10x8xf32>
    %93 = arith.mulf %90, %92 : vector<10x8xf32>
    %94 = vector.extract_strided_slice %37 {offsets = [0, 24], sizes = [10, 8], strides = [1, 1]} : vector<10x32xbf16> to vector<10x8xbf16>
    %95 = vector.extract_strided_slice %39 {offsets = [0, 24], sizes = [10, 8], strides = [1, 1]} : vector<10x32xbf16> to vector<10x8xbf16>
    %cst_33 = arith.constant dense<0.000000e+00> : vector<10x10xf32>
    %96 = tpu.matmul %94, %95, %cst_33 {dimension_numbers = #tpu.dot_dimension_numbers<[1], [1], [0], [0], [0, 0, 1, 0], [], []>} : vector<10x8xbf16>, vector<10x8xbf16>, vector<10x10xf32> -> vector<10x10xf32>
    %97 = arith.addf %96, %42 : vector<10x10xf32>
    %cst_34 = arith.constant dense<0xFF800000> : vector<10xf32>
    %98 = vector.multi_reduction <maximumf>, %97, %cst_34 [1] : vector<10x10xf32> to vector<10xf32>
    %99 = vector.shape_cast %98 : vector<10xf32> to vector<10x1xf32>
    %100 = vector.broadcast %99 : vector<10x1xf32> to vector<10x10xf32>
    %101 = arith.subf %97, %100 : vector<10x10xf32>
    %102 = math.exp %101 : vector<10x10xf32>
    %cst_35 = arith.constant dense<0.000000e+00> : vector<10xf32>
    %103 = vector.multi_reduction <add>, %102, %cst_35 [1] : vector<10x10xf32> to vector<10xf32>
    %104 = vector.shape_cast %103 : vector<10xf32> to vector<10x1xf32>
    %105 = arith.truncf %102 : vector<10x10xf32> to vector<10x10xbf16>
    %106 = vector.extract_strided_slice %41 {offsets = [0, 24], sizes = [10, 8], strides = [1, 1]} : vector<10x32xbf16> to vector<10x8xbf16>
    %cst_36 = arith.constant dense<0.000000e+00> : vector<10x8xf32>
    %107 = tpu.matmul %105, %106, %cst_36 {dimension_numbers = #tpu.dot_dimension_numbers<[1], [0], [0], [1], [0, 0, 1, 1], [], []>} : vector<10x10xbf16>, vector<10x8xbf16>, vector<10x8xf32> -> vector<10x8xf32>
    %108 = tpu.reciprocal %104 {approx = true} : vector<10x1xf32> -> vector<10x1xf32>
    %109 = vector.broadcast %108 : vector<10x1xf32> to vector<10x8xf32>
    %110 = arith.mulf %107, %109 : vector<10x8xf32>
    %111 = tpu.concatenate %59, %76, %93, %110 in 1 : vector<10x8xf32>, vector<10x8xf32>, vector<10x8xf32>, vector<10x8xf32> -> vector<10x32xf32>
    %112 = arith.truncf %111 : vector<10x32xf32> to vector<10x32xbf16>
    %c0_37 = arith.constant 0 : index
    %c0_38 = arith.constant 0 : index
    %c0_39 = arith.constant 0 : index
    %113 = vector.load %arg10[%c0_37, %c0_38, %c0_39] : memref<1x32x32xbf16, #tpu.memory_space<vmem>>, vector<1x32x32xbf16>
    %114 = vector.shape_cast %113 : vector<1x32x32xbf16> to vector<32x32xbf16>
    %cst_40 = arith.constant dense<0.000000e+00> : vector<10x32xf32>
    %115 = tpu.matmul %112, %114, %cst_40 {dimension_numbers = #tpu.dot_dimension_numbers<[1], [0], [0], [1], [0, 0, 1, 1], [], []>} : vector<10x32xbf16>, vector<32x32xbf16>, vector<10x32xf32> -> vector<10x32xf32>
    %c0_41 = arith.constant 0 : index
    %c0_42 = arith.constant 0 : index
    %c0_43 = arith.constant 0 : index
    %116 = vector.load %arg11[%c0_41, %c0_42, %c0_43] : memref<1x1x32xf32, #tpu.memory_space<vmem>>, vector<1x1x32xf32>
    %117 = vector.shape_cast %116 : vector<1x1x32xf32> to vector<1x32xf32>
    %118 = vector.broadcast %117 : vector<1x32xf32> to vector<10x32xf32>
    %119 = arith.addf %115, %118 : vector<10x32xf32>
    %120 = arith.addf %3, %119 : vector<10x32xf32>
    %c0_44 = arith.constant 0 : index
    %c0_45 = arith.constant 0 : index
    %c0_46 = arith.constant 0 : index
    %121 = vector.load %arg12[%c0_44, %c0_45, %c0_46] : memref<1x1x32xf32, #tpu.memory_space<vmem>>, vector<1x1x32xf32>
    %122 = vector.shape_cast %121 : vector<1x1x32xf32> to vector<1x32xf32>
    %c0_47 = arith.constant 0 : index
    %c0_48 = arith.constant 0 : index
    %c0_49 = arith.constant 0 : index
    %123 = vector.load %arg13[%c0_47, %c0_48, %c0_49] : memref<1x1x32xf32, #tpu.memory_space<vmem>>, vector<1x1x32xf32>
    %124 = vector.shape_cast %123 : vector<1x1x32xf32> to vector<1x32xf32>
    %cst_50 = arith.constant dense<0.000000e+00> : vector<10xf32>
    %125 = vector.multi_reduction <add>, %120, %cst_50 [1] : vector<10x32xf32> to vector<10xf32>
    %126 = vector.shape_cast %125 : vector<10xf32> to vector<10x1xf32>
    %cst_51 = arith.constant 3.200000e+01 : f32
    %127 = vector.broadcast %cst_51 : f32 to vector<10x1xf32>
    %128 = arith.divf %126, %127 : vector<10x1xf32>
    %129 = vector.broadcast %128 : vector<10x1xf32> to vector<10x32xf32>
    %130 = arith.subf %120, %129 : vector<10x32xf32>
    %131 = arith.mulf %130, %130 : vector<10x32xf32>
    %cst_52 = arith.constant dense<0.000000e+00> : vector<10xf32>
    %132 = vector.multi_reduction <add>, %131, %cst_52 [1] : vector<10x32xf32> to vector<10xf32>
    %133 = vector.shape_cast %132 : vector<10xf32> to vector<10x1xf32>
    %cst_53 = arith.constant 3.200000e+01 : f32
    %134 = vector.broadcast %cst_53 : f32 to vector<10x1xf32>
    %135 = arith.divf %133, %134 : vector<10x1xf32>
    %cst_54 = arith.constant 9.99999997E-7 : f32
    %136 = vector.broadcast %cst_54 : f32 to vector<10x1xf32>
    %137 = arith.addf %135, %136 : vector<10x1xf32>
    %138 = math.rsqrt %137 : vector<10x1xf32>
    %139 = vector.broadcast %138 : vector<10x1xf32> to vector<10x32xf32>
    %140 = arith.mulf %130, %139 : vector<10x32xf32>
    %141 = vector.broadcast %122 : vector<1x32xf32> to vector<10x32xf32>
    %142 = arith.mulf %140, %141 : vector<10x32xf32>
    %143 = vector.broadcast %124 : vector<1x32xf32> to vector<10x32xf32>
    %144 = arith.addf %142, %143 : vector<10x32xf32>
    %145 = arith.truncf %144 : vector<10x32xf32> to vector<10x32xbf16>
    %c0_55 = arith.constant 0 : index
    %c0_56 = arith.constant 0 : index
    %c0_57 = arith.constant 0 : index
    %146 = vector.load %arg14[%c0_55, %c0_56, %c0_57] : memref<1x32x128xbf16, #tpu.memory_space<vmem>>, vector<1x32x128xbf16>
    %147 = vector.shape_cast %146 : vector<1x32x128xbf16> to vector<32x128xbf16>
    %cst_58 = arith.constant dense<0.000000e+00> : vector<10x128xf32>
    %148 = tpu.matmul %145, %147, %cst_58 {dimension_numbers = #tpu.dot_dimension_numbers<[1], [0], [0], [1], [0, 0, 1, 1], [], []>} : vector<10x32xbf16>, vector<32x128xbf16>, vector<10x128xf32> -> vector<10x128xf32>
    %c0_59 = arith.constant 0 : index
    %c0_60 = arith.constant 0 : index
    %c0_61 = arith.constant 0 : index
    %149 = vector.load %arg15[%c0_59, %c0_60, %c0_61] : memref<1x1x128xf32, #tpu.memory_space<vmem>>, vector<1x1x128xf32>
    %150 = vector.shape_cast %149 : vector<1x1x128xf32> to vector<1x128xf32>
    %151 = vector.broadcast %150 : vector<1x128xf32> to vector<10x128xf32>
    %152 = arith.addf %148, %151 : vector<10x128xf32>
    %cst_62 = arith.constant 5.000000e-01 : f32
    %153 = vector.broadcast %cst_62 : f32 to vector<10x128xf32>
    %154 = arith.mulf %153, %152 : vector<10x128xf32>
    %cst_63 = arith.constant 0.707106769 : f32
    %155 = vector.broadcast %cst_63 : f32 to vector<10x128xf32>
    %156 = arith.mulf %152, %155 : vector<10x128xf32>
    %157 = math.erf %156 : vector<10x128xf32>
    %cst_64 = arith.constant 1.000000e+00 : f32
    %158 = vector.broadcast %cst_64 : f32 to vector<10x128xf32>
    %159 = arith.addf %158, %157 : vector<10x128xf32>
    %160 = arith.mulf %154, %159 : vector<10x128xf32>
    %161 = arith.truncf %160 : vector<10x128xf32> to vector<10x128xbf16>
    %c0_65 = arith.constant 0 : index
    %c0_66 = arith.constant 0 : index
    %c0_67 = arith.constant 0 : index
    %162 = vector.load %arg16[%c0_65, %c0_66, %c0_67] : memref<1x128x32xbf16, #tpu.memory_space<vmem>>, vector<1x128x32xbf16>
    %163 = vector.shape_cast %162 : vector<1x128x32xbf16> to vector<128x32xbf16>
    %cst_68 = arith.constant dense<0.000000e+00> : vector<10x32xf32>
    %164 = tpu.matmul %161, %163, %cst_68 {dimension_numbers = #tpu.dot_dimension_numbers<[1], [0], [0], [1], [0, 0, 1, 1], [], []>} : vector<10x128xbf16>, vector<128x32xbf16>, vector<10x32xf32> -> vector<10x32xf32>
    %c0_69 = arith.constant 0 : index
    %c0_70 = arith.constant 0 : index
    %c0_71 = arith.constant 0 : index
    %165 = vector.load %arg17[%c0_69, %c0_70, %c0_71] : memref<1x1x32xf32, #tpu.memory_space<vmem>>, vector<1x1x32xf32>
    %166 = vector.shape_cast %165 : vector<1x1x32xf32> to vector<1x32xf32>
    %167 = vector.broadcast %166 : vector<1x32xf32> to vector<10x32xf32>
    %168 = arith.addf %164, %167 : vector<10x32xf32>
    %169 = arith.addf %120, %168 : vector<10x32xf32>
    %c0_72 = arith.constant 0 : index
    %c0_73 = arith.constant 0 : index
    %170 = vector.load %arg21[%c0_72, %c0_73] : memref<10x32xf32, #tpu.memory_space<vmem>>, vector<10x32xf32>
    tpu.vector_store %arg21[%c0_72, %c0_73], %169 {strides = array<i32>} : memref<10x32xf32, #tpu.memory_space<vmem>>, vector<10x32xf32>,
    %c1_i32 = arith.constant 1 : i32
    %171 = arith.cmpi eq, %arg1, %c1_i32 : i32
    %172 = arith.extui %171 : i1 to i32
    %c0_i32_74 = arith.constant 0 : i32
    %173 = arith.cmpi ne, %172, %c0_i32_74 : i32
    scf.if %173 {
      %c0_75 = arith.constant 0 : index
      %c0_76 = arith.constant 0 : index
      %174 = vector.load %arg18[%c0_75, %c0_76] : memref<1x32xf32, #tpu.memory_space<vmem>>, vector<1x32xf32>
      %c0_77 = arith.constant 0 : index
      %c0_78 = arith.constant 0 : index
      %175 = vector.load %arg19[%c0_77, %c0_78] : memref<1x32xf32, #tpu.memory_space<vmem>>, vector<1x32xf32>
      %cst_79 = arith.constant dense<0.000000e+00> : vector<10xf32>
      %176 = vector.multi_reduction <add>, %169, %cst_79 [1] : vector<10x32xf32> to vector<10xf32>
      %177 = vector.shape_cast %176 : vector<10xf32> to vector<10x1xf32>
      %cst_80 = arith.constant 3.200000e+01 : f32
      %178 = vector.broadcast %cst_80 : f32 to vector<10x1xf32>
      %179 = arith.divf %177, %178 : vector<10x1xf32>
      %180 = vector.broadcast %179 : vector<10x1xf32> to vector<10x32xf32>
      %181 = arith.subf %169, %180 : vector<10x32xf32>
      %182 = arith.mulf %181, %181 : vector<10x32xf32>
      %cst_81 = arith.constant dense<0.000000e+00> : vector<10xf32>
      %183 = vector.multi_reduction <add>, %182, %cst_81 [1] : vector<10x32xf32> to vector<10xf32>
      %184 = vector.shape_cast %183 : vector<10xf32> to vector<10x1xf32>
      %cst_82 = arith.constant 3.200000e+01 : f32
      %185 = vector.broadcast %cst_82 : f32 to vector<10x1xf32>
      %186 = arith.divf %184, %185 : vector<10x1xf32>
      %cst_83 = arith.constant 9.99999997E-7 : f32
      %187 = vector.broadcast %cst_83 : f32 to vector<10x1xf32>
      %188 = arith.addf %186, %187 : vector<10x1xf32>
      %189 = math.rsqrt %188 : vector<10x1xf32>
      %190 = vector.broadcast %189 : vector<10x1xf32> to vector<10x32xf32>
      %191 = arith.mulf %181, %190 : vector<10x32xf32>
      %192 = vector.broadcast %174 : vector<1x32xf32> to vector<10x32xf32>
      %193 = arith.mulf %191, %192 : vector<10x32xf32>
      %194 = vector.broadcast %175 : vector<1x32xf32> to vector<10x32xf32>
      %195 = arith.addf %193, %194 : vector<10x32xf32>
      %c0_84 = arith.constant 0 : index
      %c0_85 = arith.constant 0 : index
      %c0_86 = arith.constant 0 : index
      %196 = vector.load %arg20[%c0_84, %c0_85, %c0_86] : memref<1x10x32xf32, #tpu.memory_space<vmem>>, vector<1x10x32xf32>
      %197 = vector.shape_cast %196 : vector<1x10x32xf32> to vector<10x32xf32>
      %198 = vector.shape_cast %195 : vector<10x32xf32> to vector<1x10x32xf32>
      tpu.vector_store %arg20[%c0_84, %c0_85, %c0_86], %198 {strides = array<i32>} : memref<1x10x32xf32, #tpu.memory_space<vmem>>, vector<1x10x32xf32>,
    } else {
    }
    return
  }
  func.func @transform_0(%arg0: i32, %arg1: i32) -> (i32, i32, i32) {
    %c0_i32 = arith.constant 0 : i32
    %c0_i32_0 = arith.constant 0 : i32
    %c0_i32_1 = arith.constant 0 : i32
    return %arg0, %c0_i32, %c0_i32_0 : i32, i32, i32
  }
  func.func @transform_1(%arg0: i32, %arg1: i32) -> (i32, i32, i32) {
    %c0_i32 = arith.constant 0 : i32
    %c0_i32_0 = arith.constant 0 : i32
    %c0_i32_1 = arith.constant 0 : i32
    return %arg0, %c0_i32, %c0_i32_0 : i32, i32, i32
  }
  func.func @transform_2(%arg0: i32, %arg1: i32) -> (i32, i32) {
    %c0_i32 = arith.constant 0 : i32
    %c0_i32_0 = arith.constant 0 : i32
    %c0_i32_1 = arith.constant 0 : i32
    return %c0_i32, %c0_i32_0 : i32, i32
  }
  func.func @transform_3(%arg0: i32, %arg1: i32) -> (i32, i32) {
    %c0_i32 = arith.constant 0 : i32
    %c0_i32_0 = arith.constant 0 : i32
    %c0_i32_1 = arith.constant 0 : i32
    return %c0_i32, %c0_i32_0 : i32, i32
  }
  func.func @transform_4(%arg0: i32, %arg1: i32) -> (i32, i32, i32) {
    %c0_i32 = arith.constant 0 : i32
    %c0_i32_0 = arith.constant 0 : i32
    %c0_i32_1 = arith.constant 0 : i32
    return %arg1, %c0_i32, %c0_i32_0 : i32, i32, i32
  }
  func.func @transform_5(%arg0: i32, %arg1: i32) -> (i32, i32, i32) {
    %c0_i32 = arith.constant 0 : i32
    %c0_i32_0 = arith.constant 0 : i32
    %c0_i32_1 = arith.constant 0 : i32
    return %arg1, %c0_i32, %c0_i32_0 : i32, i32, i32
  }
  func.func @transform_6(%arg0: i32, %arg1: i32) -> (i32, i32, i32) {
    %c0_i32 = arith.constant 0 : i32
    %c0_i32_0 = arith.constant 0 : i32
    %c0_i32_1 = arith.constant 0 : i32
    return %arg1, %c0_i32, %c0_i32_0 : i32, i32, i32
  }
  func.func @transform_7(%arg0: i32, %arg1: i32) -> (i32, i32, i32) {
    %c0_i32 = arith.constant 0 : i32
    %c0_i32_0 = arith.constant 0 : i32
    %c0_i32_1 = arith.constant 0 : i32
    return %arg1, %c0_i32, %c0_i32_0 : i32, i32, i32
  }
  func.func @transform_8(%arg0: i32, %arg1: i32) -> (i32, i32, i32) {
    %c0_i32 = arith.constant 0 : i32
    %c0_i32_0 = arith.constant 0 : i32
    %c0_i32_1 = arith.constant 0 : i32
    return %arg1, %c0_i32, %c0_i32_0 : i32, i32, i32
  }
  func.func @transform_9(%arg0: i32, %arg1: i32) -> (i32, i32, i32) {
    %c0_i32 = arith.constant 0 : i32
    %c0_i32_0 = arith.constant 0 : i32
    %c0_i32_1 = arith.constant 0 : i32
    return %arg1, %c0_i32, %c0_i32_0 : i32, i32, i32
  }
  func.func @transform_10(%arg0: i32, %arg1: i32) -> (i32, i32, i32) {
    %c0_i32 = arith.constant 0 : i32
    %c0_i32_0 = arith.constant 0 : i32
    %c0_i32_1 = arith.constant 0 : i32
    return %arg1, %c0_i32, %c0_i32_0 : i32, i32, i32
  }
  func.func @transform_11(%arg0: i32, %arg1: i32) -> (i32, i32, i32) {
    %c0_i32 = arith.constant 0 : i32
    %c0_i32_0 = arith.constant 0 : i32
    %c0_i32_1 = arith.constant 0 : i32
    return %arg1, %c0_i32, %c0_i32_0 : i32, i32, i32
  }
  func.func @transform_12(%arg0: i32, %arg1: i32) -> (i32, i32, i32) {
    %c0_i32 = arith.constant 0 : i32
    %c0_i32_0 = arith.constant 0 : i32
    %c0_i32_1 = arith.constant 0 : i32
    return %arg1, %c0_i32, %c0_i32_0 : i32, i32, i32
  }
  func.func @transform_13(%arg0: i32, %arg1: i32) -> (i32, i32, i32) {
    %c0_i32 = arith.constant 0 : i32
    %c0_i32_0 = arith.constant 0 : i32
    %c0_i32_1 = arith.constant 0 : i32
    return %arg1, %c0_i32, %c0_i32_0 : i32, i32, i32
  }
  func.func @transform_14(%arg0: i32, %arg1: i32) -> (i32, i32, i32) {
    %c0_i32 = arith.constant 0 : i32
    %c0_i32_0 = arith.constant 0 : i32
    %c0_i32_1 = arith.constant 0 : i32
    return %arg1, %c0_i32, %c0_i32_0 : i32, i32, i32
  }
  func.func @transform_15(%arg0: i32, %arg1: i32) -> (i32, i32, i32) {
    %c0_i32 = arith.constant 0 : i32
    %c0_i32_0 = arith.constant 0 : i32
    %c0_i32_1 = arith.constant 0 : i32
    return %arg1, %c0_i32, %c0_i32_0 : i32, i32, i32
  }
  func.func @transform_16(%arg0: i32, %arg1: i32) -> (i32, i32) {
    %c0_i32 = arith.constant 0 : i32
    %c0_i32_0 = arith.constant 0 : i32
    %c0_i32_1 = arith.constant 0 : i32
    return %c0_i32, %c0_i32_0 : i32, i32
  }
  func.func @transform_17(%arg0: i32, %arg1: i32) -> (i32, i32) {
    %c0_i32 = arith.constant 0 : i32
    %c0_i32_0 = arith.constant 0 : i32
    %c0_i32_1 = arith.constant 0 : i32
    return %c0_i32, %c0_i32_0 : i32, i32
  }
  func.func @transform_18(%arg0: i32, %arg1: i32) -> (i32, i32, i32) {
    %c0_i32 = arith.constant 0 : i32
    %c0_i32_0 = arith.constant 0 : i32
    %c0_i32_1 = arith.constant 0 : i32
    return %arg0, %c0_i32, %c0_i32_0 : i32, i32, i32
  }
}

</mosaic_0001>

<llo_original>
// kernel: vision_transformer_backbone.1
$region0: #{vision_transformer_backbone.1}
  #allocation0 [shape = 'u32[]', space=smem, size = 0x4, offset = 0x4, fixed_abs, tag = 'smem constant byte address 0x4 - core index']
  #allocation1 [shape = 'u32[144,128]{1,0:T(1,128)}', space=vmem, size = 0x12000, scoped, tag = 'internal scratch']
  #allocation2 [shape = 'f32[10,32]{1,0:T(8,128)}', space=vmem, size = 0x2000, scoped, tag = 'scratch operand']
  %s0 = inlined_call_operand.vmem [shape: bf16[2,10,256], index: 0, kind: input, shape index: {}]
  %s1 = inlined_call_operand.vmem [shape: f32[2,10,32], index: 1, kind: input, shape index: {}]
  %s2 = inlined_call_operand.vmem [shape: f32[10,10], index: 2, kind: input, shape index: {}]
  %s3 = inlined_call_operand.vmem [shape: bf16[256,32], index: 3, kind: input, shape index: {}]
  %s4 = inlined_call_operand.vmem [shape: f32[2,1,32], index: 4, kind: input, shape index: {}]
  %s5 = inlined_call_operand.vmem [shape: f32[2,1,32], index: 5, kind: input, shape index: {}]
  %s6 = inlined_call_operand.vmem [shape: bf16[2,32,96], index: 6, kind: input, shape index: {}]
  %s7 = inlined_call_operand.vmem [shape: f32[2,1,96], index: 7, kind: input, shape index: {}]
  %s8 = inlined_call_operand.vmem [shape: bf16[2,32,32], index: 8, kind: input, shape index: {}]
  %s9 = inlined_call_operand.vmem [shape: f32[2,1,32], index: 9, kind: input, shape index: {}]
  %s10 = inlined_call_operand.vmem [shape: f32[2,1,32], index: 10, kind: input, shape index: {}]
  %s11 = inlined_call_operand.vmem [shape: f32[2,1,32], index: 11, kind: input, shape index: {}]
  %s12 = inlined_call_operand.vmem [shape: bf16[2,32,128], index: 12, kind: input, shape index: {}]
  %s13 = inlined_call_operand.vmem [shape: f32[2,1,128], index: 13, kind: input, shape index: {}]
  %s14 = inlined_call_operand.vmem [shape: bf16[2,128,32], index: 14, kind: input, shape index: {}]
  %s15 = inlined_call_operand.vmem [shape: f32[2,1,32], index: 15, kind: input, shape index: {}]
  %s16 = inlined_call_operand.vmem [shape: f32[1,32], index: 16, kind: input, shape index: {}]
  %s17 = inlined_call_operand.vmem [shape: f32[1,32], index: 17, kind: input, shape index: {}]
  %s18 = inlined_call_operand.vmem [shape: f32[2,10,32], index: 18, kind: output, shape index: {}]
  %s19 = sld [smem:[#allocation0]]
  $region113: #{vision_transformer_backbone.1} parent=0
    _
  %s21 = ssub.s32 1, %s19
  %s22 = scalar_select 0, %s21, %s19
  loop: start=0, step=1, limit=6
  $region2: #{vision_transformer_backbone.1} parent=0 // loop_pre_header
    _
  $region3: #{vision_transformer_backbone.1} parent=0 // loop_header
    %s24 = sphi 0, %s28
    %p25 = scmp.ge.s32.totalorder %s24, 6
    %s31 = sphi 0, %s43
    %s32 = sphi 0, %s39
    %s33 = sphi 0, %s31
    %s34 = sphi 0, %s32
    %s35 = sphi 0, %s33
    %s36 = sphi 0, %s34
    %s46 = sphi 0, %s48
    %s49 = sphi 0, %s46
    %s50 = sphi 0, %s49
    %s66 = sphi 0, %s50
    %s72 = sphi 0, %s74
    %s75 = sphi 0, %s72
    %s76 = sphi 0, %s75
    %s92 = sphi 0, %s76
    %s96 = sphi 0, %s96
    %s98 = sphi 0, %s96
    %s99 = sphi 0, %s98
    %s113 = sphi 0, %s99
    %s117 = sphi 0, %s117
    %s119 = sphi 0, %s117
    %s120 = sphi 0, %s119
    %s134 = sphi 0, %s120
    %s140 = sphi 0, %s142
    %s143 = sphi 0, %s140
    %s144 = sphi 0, %s143
    %s160 = sphi 0, %s144
    %s166 = sphi 0, %s168
    %s169 = sphi 0, %s166
    %s170 = sphi 0, %s169
    %s186 = sphi 0, %s170
    %s192 = sphi 0, %s194
    %s195 = sphi 0, %s192
    %s196 = sphi 0, %s195
    %s212 = sphi 0, %s196
    %s218 = sphi 0, %s220
    %s221 = sphi 0, %s218
    %s222 = sphi 0, %s221
    %s238 = sphi 0, %s222
    %s244 = sphi 0, %s246
    %s247 = sphi 0, %s244
    %s248 = sphi 0, %s247
    %s264 = sphi 0, %s248
    %s270 = sphi 0, %s272
    %s273 = sphi 0, %s270
    %s274 = sphi 0, %s273
    %s290 = sphi 0, %s274
    %s296 = sphi 0, %s298
    %s299 = sphi 0, %s296
    %s300 = sphi 0, %s299
    %s316 = sphi 0, %s300
    %s322 = sphi 0, %s324
    %s325 = sphi 0, %s322
    %s326 = sphi 0, %s325
    %s342 = sphi 0, %s326
    %s348 = sphi 0, %s350
    %s351 = sphi 0, %s348
    %s352 = sphi 0, %s351
    %s368 = sphi 0, %s352
    %s374 = sphi 0, %s376
    %s377 = sphi 0, %s374
    %s378 = sphi 0, %s377
    %s394 = sphi 0, %s378
    %s400 = sphi 0, %s402
    %s403 = sphi 0, %s400
    %s404 = sphi 0, %s403
    %s420 = sphi 0, %s404
    %s426 = sphi 0, %s428
    %s429 = sphi 0, %s426
    %s430 = sphi 0, %s429
    %s446 = sphi 0, %s430
    %s450 = sphi 0, %s450
    %s452 = sphi 0, %s450
    %s453 = sphi 0, %s452
    %s467 = sphi 0, %s453
    %s471 = sphi 0, %s471
    %s473 = sphi 0, %s471
    %s474 = sphi 0, %s473
    %s488 = sphi 0, %s474
    %s494 = sphi 0, %s496
    %s497 = sphi 0, %s494
    %s498 = sphi 0, %s497
    %s514 = sphi 0, %s498
  $region4: #{vision_transformer_backbone.1} parent=0 // loop_header_branch
    %27 = sbr.rel (%p25) target = $region8
  $region5: #{vision_transformer_backbone.1} parent=0 // loop_body
    %s29 = ssub.s32 %s24, 1
    %s30 = ssub.s32 %s24, 2
    %s37 = sadd.s32 1, %s32
    %p38 = scmp.ge.s32.totalorder %s37, 2
    %s39 = scalar_select %p38, 0, %s37
    %s40 = sadd.s32 1, %s31
    %s41 = scalar_select %p38, %s40, %s31
    %p42 = scmp.ge.s32.totalorder %s41, 2
    %s43 = scalar_select %p42, 0, %s41
    %s44 = ssub.s32 %s31, %s43
    %p45 = scmp.eq.s32.totalorder %s44, 0
    %s47 = sadd.s32 %s46, 1
    %s48 = scalar_select %p45, %s46, %s47
    %p51 = pneg %p45
    %p52 = scmp.eq.s32.totalorder %s24, 3
    %p53 = por %p51, %p52
    %p54 = scmp.ne.s32.totalorder %s46, %s49
    %p55 = scmp.eq.s32.totalorder %s24, 0
    %p56 = por %p54, %p55
    %p57 = scmp.ne.s32.totalorder %s46, %s49
    %p58 = scmp.eq.s32.totalorder %s29, 3
    %p59 = por %p57, %p58
    %p60 = scmp.ne.s32.totalorder %s49, %s50
    %p61 = scmp.eq.s32.totalorder %s29, 0
    %p62 = por %p60, %p61
    %p63 = scmp.ne.s32.totalorder %s49, %s50
    %p64 = scmp.eq.s32.totalorder %s30, 3
    %p65 = por %p63, %p64
    %p67 = scmp.ne.s32.totalorder %s50, %s66
    %p68 = scmp.eq.s32.totalorder %s30, 0
    %p69 = por %p67, %p68
    %s70 = ssub.s32 %s31, %s43
    %p71 = scmp.eq.s32.totalorder %s70, 0
    %s73 = sadd.s32 %s72, 1
    %s74 = scalar_select %p71, %s72, %s73
    %p77 = pneg %p71
    %p78 = scmp.eq.s32.totalorder %s24, 3
    %p79 = por %p77, %p78
    %p80 = scmp.ne.s32.totalorder %s72, %s75
    %p81 = scmp.eq.s32.totalorder %s24, 0
    %p82 = por %p80, %p81
    %p83 = scmp.ne.s32.totalorder %s72, %s75
    %p84 = scmp.eq.s32.totalorder %s29, 3
    %p85 = por %p83, %p84
    %p86 = scmp.ne.s32.totalorder %s75, %s76
    %p87 = scmp.eq.s32.totalorder %s29, 0
    %p88 = por %p86, %p87
    %p89 = scmp.ne.s32.totalorder %s75, %s76
    %p90 = scmp.eq.s32.totalorder %s30, 3
    %p91 = por %p89, %p90
    %p93 = scmp.ne.s32.totalorder %s76, %s92
    %p94 = scmp.eq.s32.totalorder %s30, 0
    %p95 = por %p93, %p94
    %s97 = sadd.s32 %s96, 1
    %p100 = scmp.eq.s32.totalorder %s24, 3
    %p101 = scmp.ne.s32.totalorder %s96, %s98
    %p102 = scmp.eq.s32.totalorder %s24, 0
    %p103 = por %p101, %p102
    %p104 = scmp.ne.s32.totalorder %s96, %s98
    %p105 = scmp.eq.s32.totalorder %s29, 3
    %p106 = por %p104, %p105
    %p107 = scmp.ne.s32.totalorder %s98, %s99
    %p108 = scmp.eq.s32.totalorder %s29, 0
    %p109 = por %p107, %p108
    %p110 = scmp.ne.s32.totalorder %s98, %s99
    %p111 = scmp.eq.s32.totalorder %s30, 3
    %p112 = por %p110, %p111
    %p114 = scmp.ne.s32.totalorder %s99, %s113
    %p115 = scmp.eq.s32.totalorder %s30, 0
    %p116 = por %p114, %p115
    %s118 = sadd.s32 %s117, 1
    %p121 = scmp.eq.s32.totalorder %s24, 3
    %p122 = scmp.ne.s32.totalorder %s117, %s119
    %p123 = scmp.eq.s32.totalorder %s24, 0
    %p124 = por %p122, %p123
    %p125 = scmp.ne.s32.totalorder %s117, %s119
    %p126 = scmp.eq.s32.totalorder %s29, 3
    %p127 = por %p125, %p126
    %p128 = scmp.ne.s32.totalorder %s119, %s120
    %p129 = scmp.eq.s32.totalorder %s29, 0
    %p130 = por %p128, %p129
    %p131 = scmp.ne.s32.totalorder %s119, %s120
    %p132 = scmp.eq.s32.totalorder %s30, 3
    %p133 = por %p131, %p132
    %p135 = scmp.ne.s32.totalorder %s120, %s134
    %p136 = scmp.eq.s32.totalorder %s30, 0
    %p137 = por %p135, %p136
    %s138 = ssub.s32 %s32, %s39
    %p139 = scmp.eq.s32.totalorder %s138, 0
    %s141 = sadd.s32 %s140, 1
    %s142 = scalar_select %p139, %s140, %s141
    %p145 = pneg %p139
    %p146 = scmp.eq.s32.totalorder %s24, 3
    %p147 = por %p145, %p146
    %p148 = scmp.ne.s32.totalorder %s140, %s143
    %p149 = scmp.eq.s32.totalorder %s24, 0
    %p150 = por %p148, %p149
    %p151 = scmp.ne.s32.totalorder %s140, %s143
    %p152 = scmp.eq.s32.totalorder %s29, 3
    %p153 = por %p151, %p152
    %p154 = scmp.ne.s32.totalorder %s143, %s144
    %p155 = scmp.eq.s32.totalorder %s29, 0
    %p156 = por %p154, %p155
    %p157 = scmp.ne.s32.totalorder %s143, %s144
    %p158 = scmp.eq.s32.totalorder %s30, 3
    %p159 = por %p157, %p158
    %p161 = scmp.ne.s32.totalorder %s144, %s160
    %p162 = scmp.eq.s32.totalorder %s30, 0
    %p163 = por %p161, %p162
    %s164 = ssub.s32 %s32, %s39
    %p165 = scmp.eq.s32.totalorder %s164, 0
    %s167 = sadd.s32 %s166, 1
    %s168 = scalar_select %p165, %s166, %s167
    %p171 = pneg %p165
    %p172 = scmp.eq.s32.totalorder %s24, 3
    %p173 = por %p171, %p172
    %p174 = scmp.ne.s32.totalorder %s166, %s169
    %p175 = scmp.eq.s32.totalorder %s24, 0
    %p176 = por %p174, %p175
    %p177 = scmp.ne.s32.totalorder %s166, %s169
    %p178 = scmp.eq.s32.totalorder %s29, 3
    %p179 = por %p177, %p178
    %p180 = scmp.ne.s32.totalorder %s169, %s170
    %p181 = scmp.eq.s32.totalorder %s29, 0
    %p182 = por %p180, %p181
    %p183 = scmp.ne.s32.totalorder %s169, %s170
    %p184 = scmp.eq.s32.totalorder %s30, 3
    %p185 = por %p183, %p184
    %p187 = scmp.ne.s32.totalorder %s170, %s186
    %p188 = scmp.eq.s32.totalorder %s30, 0
    %p189 = por %p187, %p188
    %s190 = ssub.s32 %s32, %s39
    %p191 = scmp.eq.s32.totalorder %s190, 0
    %s193 = sadd.s32 %s192, 1
    %s194 = scalar_select %p191, %s192, %s193
    %p197 = pneg %p191
    %p198 = scmp.eq.s32.totalorder %s24, 3
    %p199 = por %p197, %p198
    %p200 = scmp.ne.s32.totalorder %s192, %s195
    %p201 = scmp.eq.s32.totalorder %s24, 0
    %p202 = por %p200, %p201
    %p203 = scmp.ne.s32.totalorder %s192, %s195
    %p204 = scmp.eq.s32.totalorder %s29, 3
    %p205 = por %p203, %p204
    %p206 = scmp.ne.s32.totalorder %s195, %s196
    %p207 = scmp.eq.s32.totalorder %s29, 0
    %p208 = por %p206, %p207
    %p209 = scmp.ne.s32.totalorder %s195, %s196
    %p210 = scmp.eq.s32.totalorder %s30, 3
    %p211 = por %p209, %p210
    %p213 = scmp.ne.s32.totalorder %s196, %s212
    %p214 = scmp.eq.s32.totalorder %s30, 0
    %p215 = por %p213, %p214
    %s216 = ssub.s32 %s32, %s39
    %p217 = scmp.eq.s32.totalorder %s216, 0
    %s219 = sadd.s32 %s218, 1
    %s220 = scalar_select %p217, %s218, %s219
    %p223 = pneg %p217
    %p224 = scmp.eq.s32.totalorder %s24, 3
    %p225 = por %p223, %p224
    %p226 = scmp.ne.s32.totalorder %s218, %s221
    %p227 = scmp.eq.s32.totalorder %s24, 0
    %p228 = por %p226, %p227
    %p229 = scmp.ne.s32.totalorder %s218, %s221
    %p230 = scmp.eq.s32.totalorder %s29, 3
    %p231 = por %p229, %p230
    %p232 = scmp.ne.s32.totalorder %s221, %s222
    %p233 = scmp.eq.s32.totalorder %s29, 0
    %p234 = por %p232, %p233
    %p235 = scmp.ne.s32.totalorder %s221, %s222
    %p236 = scmp.eq.s32.totalorder %s30, 3
    %p237 = por %p235, %p236
    %p239 = scmp.ne.s32.totalorder %s222, %s238
    %p240 = scmp.eq.s32.totalorder %s30, 0
    %p241 = por %p239, %p240
    %s242 = ssub.s32 %s32, %s39
    %p243 = scmp.eq.s32.totalorder %s242, 0
    %s245 = sadd.s32 %s244, 1
    %s246 = scalar_select %p243, %s244, %s245
    %p249 = pneg %p243
    %p250 = scmp.eq.s32.totalorder %s24, 3
    %p251 = por %p249, %p250
    %p252 = scmp.ne.s32.totalorder %s244, %s247
    %p253 = scmp.eq.s32.totalorder %s24, 0
    %p254 = por %p252, %p253
    %p255 = scmp.ne.s32.totalorder %s244, %s247
    %p256 = scmp.eq.s32.totalorder %s29, 3
    %p257 = por %p255, %p256
    %p258 = scmp.ne.s32.totalorder %s247, %s248
    %p259 = scmp.eq.s32.totalorder %s29, 0
    %p260 = por %p258, %p259
    %p261 = scmp.ne.s32.totalorder %s247, %s248
    %p262 = scmp.eq.s32.totalorder %s30, 3
    %p263 = por %p261, %p262
    %p265 = scmp.ne.s32.totalorder %s248, %s264
    %p266 = scmp.eq.s32.totalorder %s30, 0
    %p267 = por %p265, %p266
    %s268 = ssub.s32 %s32, %s39
    %p269 = scmp.eq.s32.totalorder %s268, 0
    %s271 = sadd.s32 %s270, 1
    %s272 = scalar_select %p269, %s270, %s271
    %p275 = pneg %p269
    %p276 = scmp.eq.s32.totalorder %s24, 3
    %p277 = por %p275, %p276
    %p278 = scmp.ne.s32.totalorder %s270, %s273
    %p279 = scmp.eq.s32.totalorder %s24, 0
    %p280 = por %p278, %p279
    %p281 = scmp.ne.s32.totalorder %s270, %s273
    %p282 = scmp.eq.s32.totalorder %s29, 3
    %p283 = por %p281, %p282
    %p284 = scmp.ne.s32.totalorder %s273, %s274
    %p285 = scmp.eq.s32.totalorder %s29, 0
    %p286 = por %p284, %p285
    %p287 = scmp.ne.s32.totalorder %s273, %s274
    %p288 = scmp.eq.s32.totalorder %s30, 3
    %p289 = por %p287, %p288
    %p291 = scmp.ne.s32.totalorder %s274, %s290
    %p292 = scmp.eq.s32.totalorder %s30, 0
    %p293 = por %p291, %p292
    %s294 = ssub.s32 %s32, %s39
    %p295 = scmp.eq.s32.totalorder %s294, 0
    %s297 = sadd.s32 %s296, 1
    %s298 = scalar_select %p295, %s296, %s297
    %p301 = pneg %p295
    %p302 = scmp.eq.s32.totalorder %s24, 3
    %p303 = por %p301, %p302
    %p304 = scmp.ne.s32.totalorder %s296, %s299
    %p305 = scmp.eq.s32.totalorder %s24, 0
    %p306 = por %p304, %p305
    %p307 = scmp.ne.s32.totalorder %s296, %s299
    %p308 = scmp.eq.s32.totalorder %s29, 3
    %p309 = por %p307, %p308
    %p310 = scmp.ne.s32.totalorder %s299, %s300
    %p311 = scmp.eq.s32.totalorder %s29, 0
    %p312 = por %p310, %p311
    %p313 = scmp.ne.s32.totalorder %s299, %s300
    %p314 = scmp.eq.s32.totalorder %s30, 3
    %p315 = por %p313, %p314
    %p317 = scmp.ne.s32.totalorder %s300, %s316
    %p318 = scmp.eq.s32.totalorder %s30, 0
    %p319 = por %p317, %p318
    %s320 = ssub.s32 %s32, %s39
    %p321 = scmp.eq.s32.totalorder %s320, 0
    %s323 = sadd.s32 %s322, 1
    %s324 = scalar_select %p321, %s322, %s323
    %p327 = pneg %p321
    %p328 = scmp.eq.s32.totalorder %s24, 3
    %p329 = por %p327, %p328
    %p330 = scmp.ne.s32.totalorder %s322, %s325
    %p331 = scmp.eq.s32.totalorder %s24, 0
    %p332 = por %p330, %p331
    %p333 = scmp.ne.s32.totalorder %s322, %s325
    %p334 = scmp.eq.s32.totalorder %s29, 3
    %p335 = por %p333, %p334
    %p336 = scmp.ne.s32.totalorder %s325, %s326
    %p337 = scmp.eq.s32.totalorder %s29, 0
    %p338 = por %p336, %p337
    %p339 = scmp.ne.s32.totalorder %s325, %s326
    %p340 = scmp.eq.s32.totalorder %s30, 3
    %p341 = por %p339, %p340
    %p343 = scmp.ne.s32.totalorder %s326, %s342
    %p344 = scmp.eq.s32.totalorder %s30, 0
    %p345 = por %p343, %p344
    %s346 = ssub.s32 %s32, %s39
    %p347 = scmp.eq.s32.totalorder %s346, 0
    %s349 = sadd.s32 %s348, 1
    %s350 = scalar_select %p347, %s348, %s349
    %p353 = pneg %p347
    %p354 = scmp.eq.s32.totalorder %s24, 3
    %p355 = por %p353, %p354
    %p356 = scmp.ne.s32.totalorder %s348, %s351
    %p357 = scmp.eq.s32.totalorder %s24, 0
    %p358 = por %p356, %p357
    %p359 = scmp.ne.s32.totalorder %s348, %s351
    %p360 = scmp.eq.s32.totalorder %s29, 3
    %p361 = por %p359, %p360
    %p362 = scmp.ne.s32.totalorder %s351, %s352
    %p363 = scmp.eq.s32.totalorder %s29, 0
    %p364 = por %p362, %p363
    %p365 = scmp.ne.s32.totalorder %s351, %s352
    %p366 = scmp.eq.s32.totalorder %s30, 3
    %p367 = por %p365, %p366
    %p369 = scmp.ne.s32.totalorder %s352, %s368
    %p370 = scmp.eq.s32.totalorder %s30, 0
    %p371 = por %p369, %p370
    %s372 = ssub.s32 %s32, %s39
    %p373 = scmp.eq.s32.totalorder %s372, 0
    %s375 = sadd.s32 %s374, 1
    %s376 = scalar_select %p373, %s374, %s375
    %p379 = pneg %p373
    %p380 = scmp.eq.s32.totalorder %s24, 3
    %p381 = por %p379, %p380
    %p382 = scmp.ne.s32.totalorder %s374, %s377
    %p383 = scmp.eq.s32.totalorder %s24, 0
    %p384 = por %p382, %p383
    %p385 = scmp.ne.s32.totalorder %s374, %s377
    %p386 = scmp.eq.s32.totalorder %s29, 3
    %p387 = por %p385, %p386
    %p388 = scmp.ne.s32.totalorder %s377, %s378
    %p389 = scmp.eq.s32.totalorder %s29, 0
    %p390 = por %p388, %p389
    %p391 = scmp.ne.s32.totalorder %s377, %s378
    %p392 = scmp.eq.s32.totalorder %s30, 3
    %p393 = por %p391, %p392
    %p395 = scmp.ne.s32.totalorder %s378, %s394
    %p396 = scmp.eq.s32.totalorder %s30, 0
    %p397 = por %p395, %p396
    %s398 = ssub.s32 %s32, %s39
    %p399 = scmp.eq.s32.totalorder %s398, 0
    %s401 = sadd.s32 %s400, 1
    %s402 = scalar_select %p399, %s400, %s401
    %p405 = pneg %p399
    %p406 = scmp.eq.s32.totalorder %s24, 3
    %p407 = por %p405, %p406
    %p408 = scmp.ne.s32.totalorder %s400, %s403
    %p409 = scmp.eq.s32.totalorder %s24, 0
    %p410 = por %p408, %p409
    %p411 = scmp.ne.s32.totalorder %s400, %s403
    %p412 = scmp.eq.s32.totalorder %s29, 3
    %p413 = por %p411, %p412
    %p414 = scmp.ne.s32.totalorder %s403, %s404
    %p415 = scmp.eq.s32.totalorder %s29, 0
    %p416 = por %p414, %p415
    %p417 = scmp.ne.s32.totalorder %s403, %s404
    %p418 = scmp.eq.s32.totalorder %s30, 3
    %p419 = por %p417, %p418
    %p421 = scmp.ne.s32.totalorder %s404, %s420
    %p422 = scmp.eq.s32.totalorder %s30, 0
    %p423 = por %p421, %p422
    %s424 = ssub.s32 %s32, %s39
    %p425 = scmp.eq.s32.totalorder %s424, 0
    %s427 = sadd.s32 %s426, 1
    %s428 = scalar_select %p425, %s426, %s427
    %p431 = pneg %p425
    %p432 = scmp.eq.s32.totalorder %s24, 3
    %p433 = por %p431, %p432
    %p434 = scmp.ne.s32.totalorder %s426, %s429
    %p435 = scmp.eq.s32.totalorder %s24, 0
    %p436 = por %p434, %p435
    %p437 = scmp.ne.s32.totalorder %s426, %s429
    %p438 = scmp.eq.s32.totalorder %s29, 3
    %p439 = por %p437, %p438
    %p440 = scmp.ne.s32.totalorder %s429, %s430
    %p441 = scmp.eq.s32.totalorder %s29, 0
    %p442 = por %p440, %p441
    %p443 = scmp.ne.s32.totalorder %s429, %s430
    %p444 = scmp.eq.s32.totalorder %s30, 3
    %p445 = por %p443, %p444
    %p447 = scmp.ne.s32.totalorder %s430, %s446
    %p448 = scmp.eq.s32.totalorder %s30, 0
    %p449 = por %p447, %p448
    %s451 = sadd.s32 %s450, 1
    %p454 = scmp.eq.s32.totalorder %s24, 3
    %p455 = scmp.ne.s32.totalorder %s450, %s452
    %p456 = scmp.eq.s32.totalorder %s24, 0
    %p457 = por %p455, %p456
    %p458 = scmp.ne.s32.totalorder %s450, %s452
    %p459 = scmp.eq.s32.totalorder %s29, 3
    %p460 = por %p458, %p459
    %p461 = scmp.ne.s32.totalorder %s452, %s453
    %p462 = scmp.eq.s32.totalorder %s29, 0
    %p463 = por %p461, %p462
    %p464 = scmp.ne.s32.totalorder %s452, %s453
    %p465 = scmp.eq.s32.totalorder %s30, 3
    %p466 = por %p464, %p465
    %p468 = scmp.ne.s32.totalorder %s453, %s467
    %p469 = scmp.eq.s32.totalorder %s30, 0
    %p470 = por %p468, %p469
    %s472 = sadd.s32 %s471, 1
    %p475 = scmp.eq.s32.totalorder %s24, 3
    %p476 = scmp.ne.s32.totalorder %s471, %s473
    %p477 = scmp.eq.s32.totalorder %s24, 0
    %p478 = por %p476, %p477
    %p479 = scmp.ne.s32.totalorder %s471, %s473
    %p480 = scmp.eq.s32.totalorder %s29, 3
    %p481 = por %p479, %p480
    %p482 = scmp.ne.s32.totalorder %s473, %s474
    %p483 = scmp.eq.s32.totalorder %s29, 0
    %p484 = por %p482, %p483
    %p485 = scmp.ne.s32.totalorder %s473, %s474
    %p486 = scmp.eq.s32.totalorder %s30, 3
    %p487 = por %p485, %p486
    %p489 = scmp.ne.s32.totalorder %s474, %s488
    %p490 = scmp.eq.s32.totalorder %s30, 0
    %p491 = por %p489, %p490
    %s492 = ssub.s32 %s31, %s43
    %p493 = scmp.eq.s32.totalorder %s492, 0
    %s495 = sadd.s32 %s494, 1
    %s496 = scalar_select %p493, %s494, %s495
    %p499 = pneg %p493
    %p500 = scmp.eq.s32.totalorder %s24, 3
    %p501 = por %p499, %p500
    %p502 = scmp.ne.s32.totalorder %s494, %s497
    %p503 = scmp.eq.s32.totalorder %s24, 0
    %p504 = por %p502, %p503
    %p505 = scmp.ne.s32.totalorder %s494, %s497
    %p506 = scmp.eq.s32.totalorder %s29, 3
    %p507 = por %p505, %p506
    %p508 = scmp.ne.s32.totalorder %s497, %s498
    %p509 = scmp.eq.s32.totalorder %s29, 0
    %p510 = por %p508, %p509
    %p511 = scmp.ne.s32.totalorder %s497, %s498
    %p512 = scmp.eq.s32.totalorder %s30, 3
    %p513 = por %p511, %p512
    %p515 = scmp.ne.s32.totalorder %s498, %s514
    %p516 = scmp.eq.s32.totalorder %s30, 0
    %p517 = por %p515, %p516
    %p518 = scmp.le.s32.totalorder 1, %s24
    %p519 = scmp.lt.s32.totalorder %s24, 5
    %p520 = pnand %p518, %p519
    %p521 = pneg %p520
    // Predicated region
    $region9: #{vision_transformer_backbone.1} parent=5 // pred_check
      _
    $region10: #{vision_transformer_backbone.1} parent=5 // pred_check_branch
      %523 = sbr.rel (%p520) target = $region12
    $region11: #{vision_transformer_backbone.1} parent=5 // pred_region
      %s524 = ssub.s32 %s24, 1
      // Predicated region
      $region13: #{vision_transformer_backbone.1} parent=11 // pred_check
        %p525 = pneg %p109
      $region14: #{vision_transformer_backbone.1} parent=11 // pred_check_branch
        %527 = sbr.rel (%p525) target = $region16
      $region15: #{vision_transformer_backbone.1} parent=11 // pred_region
        _
      $region16: #{vision_transformer_backbone.1} parent=11 // pred_fallthru
        _
      // Predicated region
      $region17: #{vision_transformer_backbone.1} parent=11 // pred_check
        %p528 = pneg %p130
      $region18: #{vision_transformer_backbone.1} parent=11 // pred_check_branch
        %530 = sbr.rel (%p528) target = $region20
      $region19: #{vision_transformer_backbone.1} parent=11 // pred_region
        _
      $region20: #{vision_transformer_backbone.1} parent=11 // pred_fallthru
        _
      // Predicated region
      $region21: #{vision_transformer_backbone.1} parent=11 // pred_check
        %p531 = pneg %p463
      $region22: #{vision_transformer_backbone.1} parent=11 // pred_check_branch
        %533 = sbr.rel (%p531) target = $region24
      $region23: #{vision_transformer_backbone.1} parent=11 // pred_region
        _
      $region24: #{vision_transformer_backbone.1} parent=11 // pred_fallthru
        _
      // Predicated region
      $region25: #{vision_transformer_backbone.1} parent=11 // pred_check
        %p534 = pneg %p484
      $region26: #{vision_transformer_backbone.1} parent=11 // pred_check_branch
        %536 = sbr.rel (%p534) target = $region28
      $region27: #{vision_transformer_backbone.1} parent=11 // pred_region
        _
      $region28: #{vision_transformer_backbone.1} parent=11 // pred_fallthru
        _
    $region12: #{vision_transformer_backbone.1} parent=5 // pred_fallthru
      _
    %p537 = scmp.lt.s32.totalorder %s24, 4
    // Predicated region
    $region29: #{vision_transformer_backbone.1} parent=5 // pred_check
      %p538 = pneg %p537
    $region30: #{vision_transformer_backbone.1} parent=5 // pred_check_branch
      %540 = sbr.rel (%p538) target = $region32
    $region31: #{vision_transformer_backbone.1} parent=5 // pred_region
      // Predicated region
      $region33: #{vision_transformer_backbone.1} parent=31 // pred_check
        %p541 = pneg %p56
      $region34: #{vision_transformer_backbone.1} parent=31 // pred_check_branch
        %543 = sbr.rel (%p541) target = $region36
      $region35: #{vision_transformer_backbone.1} parent=31 // pred_region
        %p544 = scmp.lt.s32.totalorder %s31, 1
        %s545 = scalar_select %p544, %s31, 1
        %s546 = smul.addr %s545, 4
        %s547 = smul.addr %s546, 4
        %s548 = scalar_lea.vmem %s0, %s547
      $region36: #{vision_transformer_backbone.1} parent=31 // pred_fallthru
        _
      // Predicated region
      $region37: #{vision_transformer_backbone.1} parent=31 // pred_check
        %p549 = pneg %p82
      $region38: #{vision_transformer_backbone.1} parent=31 // pred_check_branch
        %551 = sbr.rel (%p549) target = $region40
      $region39: #{vision_transformer_backbone.1} parent=31 // pred_region
        %p552 = scmp.lt.s32.totalorder %s31, 1
        %s553 = scalar_select %p552, %s31, 1
        %s554 = smul.addr %s553, 2
        %s555 = smul.addr %s554, 8
        %s556 = scalar_lea.vmem %s1, %s555
      $region40: #{vision_transformer_backbone.1} parent=31 // pred_fallthru
        _
      // Predicated region
      $region41: #{vision_transformer_backbone.1} parent=31 // pred_check
        %p557 = pneg %p150
      $region42: #{vision_transformer_backbone.1} parent=31 // pred_check_branch
        %559 = sbr.rel (%p557) target = $region44
      $region43: #{vision_transformer_backbone.1} parent=31 // pred_region
        %p560 = scmp.lt.s32.totalorder %s32, 1
        %s561 = scalar_select %p560, %s32, 1
        %s562 = scalar_lea.vmem %s4, %s561
      $region44: #{vision_transformer_backbone.1} parent=31 // pred_fallthru
        _
      // Predicated region
      $region45: #{vision_transformer_backbone.1} parent=31 // pred_check
        %p563 = pneg %p176
      $region46: #{vision_transformer_backbone.1} parent=31 // pred_check_branch
        %565 = sbr.rel (%p563) target = $region48
      $region47: #{vision_transformer_backbone.1} parent=31 // pred_region
        %p566 = scmp.lt.s32.totalorder %s32, 1
        %s567 = scalar_select %p566, %s32, 1
        %s568 = scalar_lea.vmem %s5, %s567
      $region48: #{vision_transformer_backbone.1} parent=31 // pred_fallthru
        _
      // Predicated region
      $region49: #{vision_transformer_backbone.1} parent=31 // pred_check
        %p569 = pneg %p202
      $region50: #{vision_transformer_backbone.1} parent=31 // pred_check_branch
        %571 = sbr.rel (%p569) target = $region52
      $region51: #{vision_transformer_backbone.1} parent=31 // pred_region
        %p572 = scmp.lt.s32.totalorder %s32, 1
        %s573 = scalar_select %p572, %s32, 1
        %s574 = smul.addr %s573, 4
        %s575 = smul.addr %s574, 4
        %s576 = scalar_lea.vmem %s6, %s575
      $region52: #{vision_transformer_backbone.1} parent=31 // pred_fallthru
        _
      // Predicated region
      $region53: #{vision_transformer_backbone.1} parent=31 // pred_check
        %p577 = pneg %p228
      $region54: #{vision_transformer_backbone.1} parent=31 // pred_check_branch
        %579 = sbr.rel (%p577) target = $region56
      $region55: #{vision_transformer_backbone.1} parent=31 // pred_region
        %p580 = scmp.lt.s32.totalorder %s32, 1
        %s581 = scalar_select %p580, %s32, 1
        %s582 = scalar_lea.vmem %s7, %s581
      $region56: #{vision_transformer_backbone.1} parent=31 // pred_fallthru
        _
      // Predicated region
      $region57: #{vision_transformer_backbone.1} parent=31 // pred_check
        %p583 = pneg %p254
      $region58: #{vision_transformer_backbone.1} parent=31 // pred_check_branch
        %585 = sbr.rel (%p583) target = $region60
      $region59: #{vision_transformer_backbone.1} parent=31 // pred_region
        %p586 = scmp.lt.s32.totalorder %s32, 1
        %s587 = scalar_select %p586, %s32, 1
        %s588 = smul.addr %s587, 4
        %s589 = smul.addr %s588, 4
        %s590 = scalar_lea.vmem %s8, %s589
      $region60: #{vision_transformer_backbone.1} parent=31 // pred_fallthru
        _
      // Predicated region
      $region61: #{vision_transformer_backbone.1} parent=31 // pred_check
        %p591 = pneg %p280
      $region62: #{vision_transformer_backbone.1} parent=31 // pred_check_branch
        %593 = sbr.rel (%p591) target = $region64
      $region63: #{vision_transformer_backbone.1} parent=31 // pred_region
        %p594 = scmp.lt.s32.totalorder %s32, 1
        %s595 = scalar_select %p594, %s32, 1
        %s596 = scalar_lea.vmem %s9, %s595
      $region64: #{vision_transformer_backbone.1} parent=31 // pred_fallthru
        _
      // Predicated region
      $region65: #{vision_transformer_backbone.1} parent=31 // pred_check
        %p597 = pneg %p306
      $region66: #{vision_transformer_backbone.1} parent=31 // pred_check_branch
        %599 = sbr.rel (%p597) target = $region68
      $region67: #{vision_transformer_backbone.1} parent=31 // pred_region
        %p600 = scmp.lt.s32.totalorder %s32, 1
        %s601 = scalar_select %p600, %s32, 1
        %s602 = scalar_lea.vmem %s10, %s601
      $region68: #{vision_transformer_backbone.1} parent=31 // pred_fallthru
        _
      // Predicated region
      $region69: #{vision_transformer_backbone.1} parent=31 // pred_check
        %p603 = pneg %p332
      $region70: #{vision_transformer_backbone.1} parent=31 // pred_check_branch
        %605 = sbr.rel (%p603) target = $region72
      $region71: #{vision_transformer_backbone.1} parent=31 // pred_region
        %p606 = scmp.lt.s32.totalorder %s32, 1
        %s607 = scalar_select %p606, %s32, 1
        %s608 = scalar_lea.vmem %s11, %s607
      $region72: #{vision_transformer_backbone.1} parent=31 // pred_fallthru
        _
      // Predicated region
      $region73: #{vision_transformer_backbone.1} parent=31 // pred_check
        %p609 = pneg %p358
      $region74: #{vision_transformer_backbone.1} parent=31 // pred_check_branch
        %611 = sbr.rel (%p609) target = $region76
      $region75: #{vision_transformer_backbone.1} parent=31 // pred_region
        %p612 = scmp.lt.s32.totalorder %s32, 1
        %s613 = scalar_select %p612, %s32, 1
        %s614 = smul.addr %s613, 4
        %s615 = smul.addr %s614, 4
        %s616 = scalar_lea.vmem %s12, %s615
      $region76: #{vision_transformer_backbone.1} parent=31 // pred_fallthru
        _
      // Predicated region
      $region77: #{vision_transformer_backbone.1} parent=31 // pred_check
        %p617 = pneg %p384
      $region78: #{vision_transformer_backbone.1} parent=31 // pred_check_branch
        %619 = sbr.rel (%p617) target = $region80
      $region79: #{vision_transformer_backbone.1} parent=31 // pred_region
        %p620 = scmp.lt.s32.totalorder %s32, 1
        %s621 = scalar_select %p620, %s32, 1
        %s622 = scalar_lea.vmem %s13, %s621
      $region80: #{vision_transformer_backbone.1} parent=31 // pred_fallthru
        _
      // Predicated region
      $region81: #{vision_transformer_backbone.1} parent=31 // pred_check
        %p623 = pneg %p410
      $region82: #{vision_transformer_backbone.1} parent=31 // pred_check_branch
        %625 = sbr.rel (%p623) target = $region84
      $region83: #{vision_transformer_backbone.1} parent=31 // pred_region
        %p626 = scmp.lt.s32.totalorder %s32, 1
        %s627 = scalar_select %p626, %s32, 1
        %s628 = smul.addr %s627, 16
        %s629 = smul.addr %s628, 4
        %s630 = scalar_lea.vmem %s14, %s629
      $region84: #{vision_transformer_backbone.1} parent=31 // pred_fallthru
        _
      // Predicated region
      $region85: #{vision_transformer_backbone.1} parent=31 // pred_check
        %p631 = pneg %p436
      $region86: #{vision_transformer_backbone.1} parent=31 // pred_check_branch
        %633 = sbr.rel (%p631) target = $region88
      $region87: #{vision_transformer_backbone.1} parent=31 // pred_region
        %p634 = scmp.lt.s32.totalorder %s32, 1
        %s635 = scalar_select %p634, %s32, 1
        %s636 = scalar_lea.vmem %s15, %s635
      $region88: #{vision_transformer_backbone.1} parent=31 // pred_fallthru
        _
    $region32: #{vision_transformer_backbone.1} parent=5 // pred_fallthru
      _
    %p637 = scmp.le.s32.totalorder 1, %s24
    %p638 = scmp.lt.s32.totalorder %s24, 5
    %p639 = pnand %p637, %p638
    %p640 = pneg %p639
    // Predicated region
    $region89: #{vision_transformer_backbone.1} parent=5 // pred_check
      _
    $region90: #{vision_transformer_backbone.1} parent=5 // pred_check_branch
      %642 = sbr.rel (%p639) target = $region92
    $region91: #{vision_transformer_backbone.1} parent=5 // pred_region
      %s643 = ssub.s32 %s24, 1
      %p644 = scmp.lt.s32.totalorder %s33, 1
      %s645 = scalar_select %p644, %s33, 1
      %s646 = smul.addr %s645, 4
      %s647 = smul.addr %s646, 4
      %s648 = scalar_lea.vmem %s0, %s647
      %p649 = pneg %p62
      %p650 = pneg %p59
      %p651 = scmp.lt.s32.totalorder %s33, 1
      %s652 = scalar_select %p651, %s33, 1
      %s653 = smul.addr %s652, 2
      %s654 = smul.addr %s653, 8
      %s655 = scalar_lea.vmem %s1, %s654
      %p656 = pneg %p88
      %p657 = pneg %p85
      %p658 = pneg %p109
      %p659 = pneg %p106
      %p660 = pneg %p130
      %p661 = pneg %p127
      %p662 = scmp.lt.s32.totalorder %s34, 1
      %s663 = scalar_select %p662, %s34, 1
      %s664 = scalar_lea.vmem %s4, %s663
      %p665 = pneg %p156
      %p666 = pneg %p153
      %p667 = scmp.lt.s32.totalorder %s34, 1
      %s668 = scalar_select %p667, %s34, 1
      %s669 = scalar_lea.vmem %s5, %s668
      %p670 = pneg %p182
      %p671 = pneg %p179
      %p672 = scmp.lt.s32.totalorder %s34, 1
      %s673 = scalar_select %p672, %s34, 1
      %s674 = smul.addr %s673, 4
      %s675 = smul.addr %s674, 4
      %s676 = scalar_lea.vmem %s6, %s675
      %p677 = pneg %p208
      %p678 = pneg %p205
      %p679 = scmp.lt.s32.totalorder %s34, 1
      %s680 = scalar_select %p679, %s34, 1
      %s681 = scalar_lea.vmem %s7, %s680
      %p682 = pneg %p234
      %p683 = pneg %p231
      %p684 = scmp.lt.s32.totalorder %s34, 1
      %s685 = scalar_select %p684, %s34, 1
      %s686 = smul.addr %s685, 4
      %s687 = smul.addr %s686, 4
      %s688 = scalar_lea.vmem %s8, %s687
      %p689 = pneg %p260
      %p690 = pneg %p257
      %p691 = scmp.lt.s32.totalorder %s34, 1
      %s692 = scalar_select %p691, %s34, 1
      %s693 = scalar_lea.vmem %s9, %s692
      %p694 = pneg %p286
      %p695 = pneg %p283
      %p696 = scmp.lt.s32.totalorder %s34, 1
      %s697 = scalar_select %p696, %s34, 1
      %s698 = scalar_lea.vmem %s10, %s697
      %p699 = pneg %p312
      %p700 = pneg %p309
      %p701 = scmp.lt.s32.totalorder %s34, 1
      %s702 = scalar_select %p701, %s34, 1
      %s703 = scalar_lea.vmem %s11, %s702
      %p704 = pneg %p338
      %p705 = pneg %p335
      %p706 = scmp.lt.s32.totalorder %s34, 1
      %s707 = scalar_select %p706, %s34, 1
      %s708 = smul.addr %s707, 4
      %s709 = smul.addr %s708, 4
      %s710 = scalar_lea.vmem %s12, %s709
      %p711 = pneg %p364
      %p712 = pneg %p361
      %p713 = scmp.lt.s32.totalorder %s34, 1
      %s714 = scalar_select %p713, %s34, 1
      %s715 = scalar_lea.vmem %s13, %s714
      %p716 = pneg %p390
      %p717 = pneg %p387
      %p718 = scmp.lt.s32.totalorder %s34, 1
      %s719 = scalar_select %p718, %s34, 1
      %s720 = smul.addr %s719, 16
      %s721 = smul.addr %s720, 4
      %s722 = scalar_lea.vmem %s14, %s721
      %p723 = pneg %p416
      %p724 = pneg %p413
      %p725 = scmp.lt.s32.totalorder %s34, 1
      %s726 = scalar_select %p725, %s34, 1
      %s727 = scalar_lea.vmem %s15, %s726
      %p728 = pneg %p442
      %p729 = pneg %p439
      %p730 = pneg %p463
      %p731 = pneg %p460
      %p732 = pneg %p484
      %p733 = pneg %p481
      %p734 = pneg %p510
      %p735 = pneg %p507
      %p736 = scmp.lt.s32.totalorder %s33, 1
      %s737 = scalar_select %p736, %s33, 1
      %s738 = smul.addr %s737, 2
      %s739 = smul.addr %s738, 8
      %s740 = scalar_lea.vmem %s18, %s739
      %p741 = scmp.lt.s32.totalorder %s33, 1
      %s742 = scalar_select %p741, %s33, 1
      %s743 = smul.addr %s742, 4
      %s744 = smul.addr %s743, 4
      %s745 = scalar_lea.vmem %s0, %s744
      %p746 = scmp.lt.s32.totalorder %s33, 1
      %s747 = scalar_select %p746, %s33, 1
      %s748 = smul.addr %s747, 2
      %s749 = smul.addr %s748, 8
      %s750 = scalar_lea.vmem %s1, %s749
      %p751 = scmp.lt.s32.totalorder %s34, 1
      %s752 = scalar_select %p751, %s34, 1
      %s753 = scalar_lea.vmem %s4, %s752
      %p754 = scmp.lt.s32.totalorder %s34, 1
      %s755 = scalar_select %p754, %s34, 1
      %s756 = scalar_lea.vmem %s5, %s755
      %p757 = scmp.lt.s32.totalorder %s34, 1
      %s758 = scalar_select %p757, %s34, 1
      %s759 = smul.addr %s758, 4
      %s760 = smul.addr %s759, 4
      %s761 = scalar_lea.vmem %s6, %s760
      %p762 = scmp.lt.s32.totalorder %s34, 1
      %s763 = scalar_select %p762, %s34, 1
      %s764 = scalar_lea.vmem %s7, %s763
      %p765 = scmp.lt.s32.totalorder %s34, 1
      %s766 = scalar_select %p765, %s34, 1
      %s767 = smul.addr %s766, 4
      %s768 = smul.addr %s767, 4
      %s769 = scalar_lea.vmem %s8, %s768
      %p770 = scmp.lt.s32.totalorder %s34, 1
      %s771 = scalar_select %p770, %s34, 1
      %s772 = scalar_lea.vmem %s9, %s771
      %p773 = scmp.lt.s32.totalorder %s34, 1
      %s774 = scalar_select %p773, %s34, 1
      %s775 = scalar_lea.vmem %s10, %s774
      %p776 = scmp.lt.s32.totalorder %s34, 1
      %s777 = scalar_select %p776, %s34, 1
      %s778 = scalar_lea.vmem %s11, %s777
      %p779 = scmp.lt.s32.totalorder %s34, 1
      %s780 = scalar_select %p779, %s34, 1
      %s781 = smul.addr %s780, 4
      %s782 = smul.addr %s781, 4
      %s783 = scalar_lea.vmem %s12, %s782
      %p784 = scmp.lt.s32.totalorder %s34, 1
      %s785 = scalar_select %p784, %s34, 1
      %s786 = scalar_lea.vmem %s13, %s785
      %p787 = scmp.lt.s32.totalorder %s34, 1
      %s788 = scalar_select %p787, %s34, 1
      %s789 = smul.addr %s788, 16
      %s790 = smul.addr %s789, 4
      %s791 = scalar_lea.vmem %s14, %s790
      %p792 = scmp.lt.s32.totalorder %s34, 1
      %s793 = scalar_select %p792, %s34, 1
      %s794 = scalar_lea.vmem %s15, %s793
      %p795 = scmp.lt.s32.totalorder %s33, 1
      %s796 = scalar_select %p795, %s33, 1
      %s797 = smul.addr %s796, 2
      %s798 = smul.addr %s797, 8
      %s799 = scalar_lea.vmem %s18, %s798
      %p801 = scmp.eq.s32.totalorder %s34, 0
      // Predicated region
      $region93: #{vision_transformer_backbone.1} parent=91 // pred_check
        %p802 = pneg %p801
      $region94: #{vision_transformer_backbone.1} parent=91 // pred_check_branch
        %804 = sbr.rel (%p802) target = $region96
      $region95: #{vision_transformer_backbone.1} parent=91 // pred_region
        %v805 = vld [vmem:[%s745] sm:$0xff]
        %v806 = vld [vmem:[%s745 + $0x8] sm:$0x11]
        %v807 = vld [vmem:[%s3] sm:$0xf]
        %v808 = vld [vmem:[%s3 + $0x4] sm:$0xf]
        %v809 = vld [vmem:[%s3 + $0x8] sm:$0xf]
        %v810 = vld [vmem:[%s3 + $0xc] sm:$0xf]
        %v811 = vld [vmem:[%s3 + $0x10] sm:$0xf]
        %v812 = vld [vmem:[%s3 + $0x14] sm:$0xf]
        %v813 = vld [vmem:[%s3 + $0x18] sm:$0xf]
        %v814 = vld [vmem:[%s3 + $0x1c] sm:$0xf]
        %v815 = vld [vmem:[%s3 + $0x20] sm:$0xf]
        %v816 = vld [vmem:[%s3 + $0x24] sm:$0xf]
        %v817 = vld [vmem:[%s3 + $0x28] sm:$0xf]
        %v818 = vld [vmem:[%s3 + $0x2c] sm:$0xf]
        %v819 = vld [vmem:[%s3 + $0x30] sm:$0xf]
        %v820 = vld [vmem:[%s3 + $0x34] sm:$0xf]
        %v821 = vld [vmem:[%s3 + $0x38] sm:$0xf]
        %v822 = vld [vmem:[%s3 + $0x3c] sm:$0xf]
        %v823 = vld [vmem:[%s3 + $0x40] sm:$0xf]
        %v824 = vld [vmem:[%s3 + $0x44] sm:$0xf]
        %v825 = vld [vmem:[%s3 + $0x48] sm:$0xf]
        %v826 = vld [vmem:[%s3 + $0x4c] sm:$0xf]
        %v827 = vld [vmem:[%s3 + $0x50] sm:$0xf]
        %v828 = vld [vmem:[%s3 + $0x54] sm:$0xf]
        %v829 = vld [vmem:[%s3 + $0x58] sm:$0xf]
        %v830 = vld [vmem:[%s3 + $0x5c] sm:$0xf]
        %v831 = vld [vmem:[%s3 + $0x60] sm:$0xf]
        %v832 = vld [vmem:[%s3 + $0x64] sm:$0xf]
        %v833 = vld [vmem:[%s3 + $0x68] sm:$0xf]
        %v834 = vld [vmem:[%s3 + $0x6c] sm:$0xf]
        %v835 = vld [vmem:[%s3 + $0x70] sm:$0xf]
        %v836 = vld [vmem:[%s3 + $0x74] sm:$0xf]
        %v837 = vld [vmem:[%s3 + $0x78] sm:$0xf]
        %v838 = vld [vmem:[%s3 + $0x7c] sm:$0xf]
        %v839 = vld [vmem:[%s750] sm:$0xff]
        %v840 = vld [vmem:[%s750 + $0x8] sm:$0x3]
        %v843 = vunpack.c.l.b16 %v805
        %v844 = vunpack.c.h.b16 %v805
        %v845 = vunpack.c.l.b16 %v806
        %v846 = vunpack.c.h.b16 %v806
        %v847 = vpack.c.b16 %v845, %v843
        %v848 = vpack.c.b16 %v846, %v844
        %v883 = vunpack.c.l.b16 %v807
        %v884 = vunpack.c.l.b16 %v808
        %v885 = vunpack.c.l.b16 %v809
        %v886 = vunpack.c.l.b16 %v810
        %v887 = vunpack.c.l.b16 %v811
        %v888 = vunpack.c.l.b16 %v812
        %v889 = vunpack.c.l.b16 %v813
        %v890 = vunpack.c.l.b16 %v814
        %v891 = vunpack.c.l.b16 %v815
        %v892 = vunpack.c.l.b16 %v816
        %v893 = vunpack.c.l.b16 %v817
        %v894 = vunpack.c.l.b16 %v818
        %v895 = vunpack.c.l.b16 %v819
        %v896 = vunpack.c.l.b16 %v820
        %v897 = vunpack.c.l.b16 %v821
        %v898 = vunpack.c.l.b16 %v822
        %v899 = vunpack.c.l.b16 %v823
        %v900 = vunpack.c.l.b16 %v824
        %v901 = vunpack.c.l.b16 %v825
        %v902 = vunpack.c.l.b16 %v826
        %v903 = vunpack.c.l.b16 %v827
        %v904 = vunpack.c.l.b16 %v828
        %v905 = vunpack.c.l.b16 %v829
        %v906 = vunpack.c.l.b16 %v830
        %v907 = vunpack.c.l.b16 %v831
        %v908 = vunpack.c.l.b16 %v832
        %v909 = vunpack.c.l.b16 %v833
        %v910 = vunpack.c.l.b16 %v834
        %v911 = vunpack.c.l.b16 %v835
        %v912 = vunpack.c.l.b16 %v836
        %v913 = vunpack.c.l.b16 %v837
        %v914 = vunpack.c.l.b16 %v838
        %v915 = vpack.c.b16 %v884, %v883
        %v916 = vpack.c.b16 %v886, %v885
        %v917 = vpack.c.b16 %v888, %v887
        %v918 = vpack.c.b16 %v890, %v889
        %v919 = vpack.c.b16 %v892, %v891
        %v920 = vpack.c.b16 %v894, %v893
        %v921 = vpack.c.b16 %v896, %v895
        %v922 = vpack.c.b16 %v898, %v897
        %v923 = vpack.c.b16 %v900, %v899
        %v924 = vpack.c.b16 %v902, %v901
        %v925 = vpack.c.b16 %v904, %v903
        %v926 = vpack.c.b16 %v906, %v905
        %v927 = vpack.c.b16 %v908, %v907
        %v928 = vpack.c.b16 %v910, %v909
        %v929 = vpack.c.b16 %v912, %v911
        %v930 = vpack.c.b16 %v914, %v913
        %947 = vmatprep.subr.bf16.mxu0 0
        %948 = vmatpush1.bf16.msra.mxu0 %v915
        %949 = vmatprep.subr.bf16.mxu0 0
        %950 = vmatpush1.bf16.msra.mxu0 %v916
        %951 = vmatprep.subr.bf16.mxu0 0
        %952 = vmatpush1.bf16.msra.mxu0 %v917
        %953 = vmatprep.subr.bf16.mxu0 0
        %954 = vmatpush1.bf16.msra.mxu0 %v918
        %955 = vmatprep.subr.bf16.mxu0 0
        %956 = vmatpush1.bf16.msra.mxu0 %v919
        %957 = vmatprep.subr.bf16.mxu0 0
        %958 = vmatpush1.bf16.msra.mxu0 %v920
        %959 = vmatprep.subr.bf16.mxu0 0
        %960 = vmatpush1.bf16.msra.mxu0 %v921
        %961 = vmatprep.subr.bf16.mxu0 0
        %962 = vmatpush1.bf16.msra.mxu0 %v922
        %963 = vmatprep.subr.bf16.mxu0 0
        %964 = vmatpush1.bf16.msra.mxu0 %v923
        %965 = vmatprep.subr.bf16.mxu0 0
        %966 = vmatpush1.bf16.msra.mxu0 %v924
        %967 = vmatprep.subr.bf16.mxu0 0
        %968 = vmatpush1.bf16.msra.mxu0 %v925
        %969 = vmatprep.subr.bf16.mxu0 0
        %970 = vmatpush1.bf16.msra.mxu0 %v926
        %971 = vmatprep.subr.bf16.mxu0 0
        %972 = vmatpush1.bf16.msra.mxu0 %v927
        %973 = vmatprep.subr.bf16.mxu0 0
        %974 = vmatpush1.bf16.msra.mxu0 %v928
        %975 = vmatprep.subr.bf16.mxu0 0
        %976 = vmatpush1.bf16.msra.mxu0 %v929
        %977 = vmatprep.subr.bf16.mxu0 0
        %978 = vmatpush1.bf16.msra.mxu0 %v930
        %979 = vmatprep.mubr.bf16.mxu0 %v848
        %980 = vmatmul.mubr.bf16.gmra.mrb[0].mxu0 %v847
        %v981 = vpop.f32.mrb[0].mxu0
        %v982 = vadd.f32 %v839, %v981
        %v983 = vpop.f32.mrb[0].mxu0
        %v984 = vpop.f32.mrb[0].mxu0
        %v985 = vadd.f32 %v840, %v984
        %v986 = vpop.f32.mrb[0].mxu0
        %987 = vdwg.mxu0
        %vm988 = vcmask 261120
        %989 = vst.msk [vmem:[#allocation2] sm:$0xff] %vm988, %v982
        %vm990 = vcmask 254976
        %991 = vst.msk [vmem:[#allocation2 + $0x8] sm:$0x3] %vm990, %v985
      $region96: #{vision_transformer_backbone.1} parent=91 // pred_fallthru
        _
      %v992 = vld [vmem:[#allocation2] sm:$0xff]
      %v993 = vld [vmem:[#allocation2 + $0x8] sm:$0x3]
      %v994 = vld [vmem:[%s753] sm:$0x1]
      %v995 = vld [vmem:[%s756] sm:$0x1]
      %vm996 = vcmask 261120
      %v997 = vsel %vm996, %v992, 0.0
      %998 = vadd.xlane.f32.xlu0 %v997
      %v999 = vpop.xlane.xlu0 %998
      %vm1000 = vcmask 254976
      %v1001 = vsel %vm1000, %v993, 0.0
      %1002 = vadd.xlane.f32.xlu0 %v1001
      %v1003 = vpop.xlane.xlu0 %1002
      %v1004 = vrcp.pop 32.0
      %v1005 = vmul.f32 %v999, %v1004
      %v1006 = vmul.f32 %v1003, %v1004
      %v1007 = vsub.f32 %v992, %v1005
      %v1008 = vsub.f32 %v993, %v1006
      %v1009 = vmul.f32 %v1007, %v1007
      %v1010 = vmul.f32 %v1008, %v1008
      %v1011 = vsel %vm996, %v1009, 0.0
      %1012 = vadd.xlane.f32.xlu0 %v1011
      %v1013 = vpop.xlane.xlu0 %1012
      %v1014 = vsel %vm1000, %v1010, 0.0
      %1015 = vadd.xlane.f32.xlu0 %v1014
      %v1016 = vpop.xlane.xlu0 %1015
      %v1017 = vmul.f32 %v1013, %v1004
      %v1018 = vmul.f32 %v1016, %v1004
      %v1019 = vadd.f32 %v1017, 1e-06
      %v1020 = vadd.f32 %v1018, 1e-06
      %v1021 = vrsqrt.pop %v1019
      %v1022 = vrsqrt.pop %v1020
      %v1023 = vmul.f32 %v1007, %v1021
      %v1024 = vmul.f32 %v1008, %v1022
      %v1026 = vlaneseq
      %v1027 = vshrl.u32 %v1026, 7
      %v1028 = vsub.s32 0, %v1027
      %v1029 = vrot.slane %v994, %v1028
      %v1031 = vmul.f32 %v1023, %v1029
      %v1032 = vmul.f32 %v1024, %v1029
      %v1034 = vlaneseq
      %v1035 = vshrl.u32 %v1034, 7
      %v1036 = vsub.s32 0, %v1035
      %v1037 = vrot.slane %v995, %v1036
      %v1039 = vadd.f32 %v1031, %v1037
      %v1040 = vadd.f32 %v1032, %v1037
      %v1041 = vpack.c.bf16 %v1040, %v1039
      %v1042 = vld [vmem:[%s761] sm:$0xf]
      %v1043 = vld [vmem:[%s761 + $0x4] sm:$0xf]
      %v1044 = vld [vmem:[%s761 + $0x8] sm:$0xf]
      %v1045 = vld [vmem:[%s761 + $0xc] sm:$0xf]
      %v1046 = vld [vmem:[%s764] sm:$0x1]
      %v1048 = vlaneseq
      %v1049 = vshrl.u32 %v1048, 7
      %v1050 = vsub.s32 0, %v1049
      %v1051 = vrot.slane %v1046, %v1050
      %v1057 = vunpack.c.l.b16 %v1042
      %v1058 = vunpack.c.l.b16 %v1043
      %v1059 = vunpack.c.l.b16 %v1044
      %v1060 = vunpack.c.l.b16 %v1045
      %v1061 = vpack.c.b16 %v1058, %v1057
      %v1062 = vpack.c.b16 %v1060, %v1059
      %v1066 = vsel %vm996, %v1041, 0
      %1068 = vmatprep.subr.bf16.mxu0 0
      %1069 = vmatpush1.bf16.msra.mxu0 %v1061
      %1070 = vmatprep.subr.bf16.mxu0 0
      %1071 = vmatpush1.bf16.msra.mxu0 %v1062
      %1072 = vmatprep.subr.bf16.mxu0 0
      %1073 = vmatpush1.bf16.msra.mxu0 0
      %1074 = vmatprep.subr.bf16.mxu0 0
      %1075 = vmatpush1.bf16.msra.mxu0 0
      %1076 = vmatprep.subr.bf16.mxu0 0
      %1077 = vmatpush1.bf16.msra.mxu0 0
      %1078 = vmatprep.subr.bf16.mxu0 0
      %1079 = vmatpush1.bf16.msra.mxu0 0
      %1080 = vmatprep.subr.bf16.mxu0 0
      %1081 = vmatpush1.bf16.msra.mxu0 0
      %1082 = vmatprep.subr.bf16.mxu0 0
      %1083 = vmatpush1.bf16.msra.mxu0 0
      %1084 = vmatprep.subr.bf16.mxu0 0
      %1085 = vmatpush1.bf16.msra.mxu0 0
      %1086 = vmatprep.subr.bf16.mxu0 0
      %1087 = vmatpush1.bf16.msra.mxu0 0
      %1088 = vmatprep.subr.bf16.mxu0 0
      %1089 = vmatpush1.bf16.msra.mxu0 0
      %1090 = vmatprep.subr.bf16.mxu0 0
      %1091 = vmatpush1.bf16.msra.mxu0 0
      %1092 = vmatprep.subr.bf16.mxu0 0
      %1093 = vmatpush1.bf16.msra.mxu0 0
      %1094 = vmatprep.subr.bf16.mxu0 0
      %1095 = vmatpush1.bf16.msra.mxu0 0
      %1096 = vmatprep.subr.bf16.mxu0 0
      %1097 = vmatpush1.bf16.msra.mxu0 0
      %1098 = vmatprep.subr.bf16.mxu0 0
      %1099 = vmatpush1.bf16.msra.mxu0 0
      %1100 = vmatprep.mubr.bf16.mxu0 0
      %1101 = vmatmul.mubr.bf16.gmra.mrb[0].mxu0 %v1066
      %v1102 = vpop.f32.mrb[0].mxu0
      %v1103 = vadd.f32 %v1051, %v1102
      %v1104 = vpop.f32.mrb[0].mxu0
      %v1105 = vpop.f32.mrb[0].mxu0
      %v1106 = vadd.f32 %v1051, %v1105
      %v1107 = vpop.f32.mrb[0].mxu0
      %1108 = vdwg.mxu0
      %v1109 = vpack.c.bf16 %v1106, %v1103
      %v1110 = vld [vmem:[%s2] sm:$0xff]
      %v1111 = vld [vmem:[%s2 + $0x8] sm:$0x3]
      %1113 = vrot.lane.b32.xlu0 %v1109, 96
      %v1114 = vpop.permute.xlu0 %1113
      %vm1115 = vcmask 64512
      %v1117 = vsel %vm1115, %v1109, 0
      %v1120 = vsel %vm1115, %v1114, 0
      %1122 = vmatprep.subr.bf16.mxu0 0
      %1123 = vmatpush1.bf16.xpose.msra.mxu0 %v1120
      %1124 = vmatprep.subr.bf16.mxu0 0
      %1125 = vmatpush1.bf16.xpose.msra.mxu0 0
      %1126 = vmatprep.subr.bf16.mxu0 0
      %1127 = vmatpush1.bf16.xpose.msra.mxu0 0
      %1128 = vmatprep.subr.bf16.mxu0 0
      %1129 = vmatpush1.bf16.xpose.msra.mxu0 0
      %1130 = vmatprep.subr.bf16.mxu0 0
      %1131 = vmatpush1.bf16.xpose.msra.mxu0 0
      %1132 = vmatprep.subr.bf16.mxu0 0
      %1133 = vmatpush1.bf16.xpose.msra.mxu0 0
      %1134 = vmatprep.subr.bf16.mxu0 0
      %1135 = vmatpush1.bf16.xpose.msra.mxu0 0
      %1136 = vmatprep.subr.bf16.mxu0 0
      %1137 = vmatpush1.bf16.xpose.msra.mxu0 0
      %1138 = vmatprep.subr.bf16.mxu0 0
      %1139 = vmatpush1.bf16.xpose.msra.mxu0 0
      %1140 = vmatprep.subr.bf16.mxu0 0
      %1141 = vmatpush1.bf16.xpose.msra.mxu0 0
      %1142 = vmatprep.subr.bf16.mxu0 0
      %1143 = vmatpush1.bf16.xpose.msra.mxu0 0
      %1144 = vmatprep.subr.bf16.mxu0 0
      %1145 = vmatpush1.bf16.xpose.msra.mxu0 0
      %1146 = vmatprep.subr.bf16.mxu0 0
      %1147 = vmatpush1.bf16.xpose.msra.mxu0 0
      %1148 = vmatprep.subr.bf16.mxu0 0
      %1149 = vmatpush1.bf16.xpose.msra.mxu0 0
      %1150 = vmatprep.subr.bf16.mxu0 0
      %1151 = vmatpush1.bf16.xpose.msra.mxu0 0
      %1152 = vmatprep.subr.bf16.mxu0 0
      %1153 = vmatpush1.bf16.xpose.msra.mxu0 0
      %1154 = vmatprep.mubr.bf16.mxu0 0
      %1155 = vmatmul.mubr.bf16.gmra.mrb[0].mxu0 %v1117
      %v1156 = vpop.f32.mrb[0].mxu0
      %v1157 = vadd.f32 %v1110, %v1156
      %v1158 = vpop.f32.mrb[0].mxu0
      %v1159 = vpop.f32.mrb[0].mxu0
      %v1160 = vadd.f32 %v1111, %v1159
      %v1161 = vpop.f32.mrb[0].mxu0
      %1162 = vdwg.mxu0
      %vm1163 = vcmask 80896
      %v1164 = vsel %vm1163, %v1157, -inf
      %1165 = vmax.xlane.f32.xlu0 %v1164
      %v1166 = vpop.xlane.xlu0 %1165
      %vm1167 = vcmask 74752
      %v1168 = vsel %vm1167, %v1160, -inf
      %1169 = vmax.xlane.f32.xlu0 %v1168
      %v1170 = vpop.xlane.xlu0 %1169
      %v1171 = vsub.f32 %v1157, %v1166
      %v1172 = vsub.f32 %v1160, %v1170
      %v1173 = vmul.f32 %v1171, 1.442695
      %v1174 = vpow.pop %v1173
      %v1175 = vmul.f32 %v1172, 1.442695
      %v1176 = vpow.pop %v1175
      %v1177 = vsel %vm1163, %v1174, 0.0
      %1178 = vadd.xlane.f32.xlu0 %v1177
      %v1179 = vpop.xlane.xlu0 %1178
      %v1180 = vsel %vm1167, %v1176, 0.0
      %1181 = vadd.xlane.f32.xlu0 %v1180
      %v1182 = vpop.xlane.xlu0 %1181
      %v1183 = vpack.c.bf16 %v1176, %v1174
      %1184 = vrot.lane.b32.xlu0 %v1109, 64
      %v1185 = vpop.permute.xlu0 %1184
      %v1187 = vsel %vm1163, %v1183, 0
      %vm1189 = vcmask 1044480
      %v1191 = vsel %vm1189, %v1185, 0
      %1193 = vmatprep.subr.bf16.mxu0 0
      %1194 = vmatpush1.bf16.msra.mxu0 %v1191
      %1195 = vmatprep.subr.bf16.mxu0 0
      %1196 = vmatpush1.bf16.msra.mxu0 0
      %1197 = vmatprep.subr.bf16.mxu0 0
      %1198 = vmatpush1.bf16.msra.mxu0 0
      %1199 = vmatprep.subr.bf16.mxu0 0
      %1200 = vmatpush1.bf16.msra.mxu0 0
      %1201 = vmatprep.subr.bf16.mxu0 0
      %1202 = vmatpush1.bf16.msra.mxu0 0
      %1203 = vmatprep.subr.bf16.mxu0 0
      %1204 = vmatpush1.bf16.msra.mxu0 0
      %1205 = vmatprep.subr.bf16.mxu0 0
      %1206 = vmatpush1.bf16.msra.mxu0 0
      %1207 = vmatprep.subr.bf16.mxu0 0
      %1208 = vmatpush1.bf16.msra.mxu0 0
      %1209 = vmatprep.subr.bf16.mxu0 0
      %1210 = vmatpush1.bf16.msra.mxu0 0
      %1211 = vmatprep.subr.bf16.mxu0 0
      %1212 = vmatpush1.bf16.msra.mxu0 0
      %1213 = vmatprep.subr.bf16.mxu0 0
      %1214 = vmatpush1.bf16.msra.mxu0 0
      %1215 = vmatprep.subr.bf16.mxu0 0
      %1216 = vmatpush1.bf16.msra.mxu0 0
      %1217 = vmatprep.subr.bf16.mxu0 0
      %1218 = vmatpush1.bf16.msra.mxu0 0
      %1219 = vmatprep.subr.bf16.mxu0 0
      %1220 = vmatpush1.bf16.msra.mxu0 0
      %1221 = vmatprep.subr.bf16.mxu0 0
      %1222 = vmatpush1.bf16.msra.mxu0 0
      %1223 = vmatprep.subr.bf16.mxu0 0
      %1224 = vmatpush1.bf16.msra.mxu0 0
      %1225 = vmatprep.mubr.bf16.mxu0 0
      %1226 = vmatmul.mubr.bf16.gmra.mrb[0].mxu0 %v1187
      %v1227 = vpop.f32.mrb[0].mxu0
      %v1228 = vadd.f32 0.0, %v1227
      %v1229 = vpop.f32.mrb[0].mxu0
      %v1230 = vpop.f32.mrb[0].mxu0
      %v1231 = vadd.f32 0.0, %v1230
      %v1232 = vpop.f32.mrb[0].mxu0
      %1233 = vdwg.mxu0
      %v1234 = vrcp.pop %v1179
      %v1235 = vrcp.pop %v1182
      %v1236 = vmul.f32 %v1228, %v1234
      %v1237 = vmul.f32 %v1231, %v1235
      %1238 = vrot.lane.b32.xlu0 %v1109, 120
      %v1239 = vpop.permute.xlu0 %1238
      %1240 = vrot.lane.b32.xlu0 %v1109, 88
      %v1241 = vpop.permute.xlu0 %1240
      %v1243 = vsel %vm1115, %v1239, 0
      %v1246 = vsel %vm1115, %v1241, 0
      %1248 = vmatprep.subr.bf16.mxu0 0
      %1249 = vmatpush1.bf16.xpose.msra.mxu0 %v1246
      %1250 = vmatprep.subr.bf16.mxu0 0
      %1251 = vmatpush1.bf16.xpose.msra.mxu0 0
      %1252 = vmatprep.subr.bf16.mxu0 0
      %1253 = vmatpush1.bf16.xpose.msra.mxu0 0
      %1254 = vmatprep.subr.bf16.mxu0 0
      %1255 = vmatpush1.bf16.xpose.msra.mxu0 0
      %1256 = vmatprep.subr.bf16.mxu0 0
      %1257 = vmatpush1.bf16.xpose.msra.mxu0 0
      %1258 = vmatprep.subr.bf16.mxu0 0
      %1259 = vmatpush1.bf16.xpose.msra.mxu0 0
      %1260 = vmatprep.subr.bf16.mxu0 0
      %1261 = vmatpush1.bf16.xpose.msra.mxu0 0
      %1262 = vmatprep.subr.bf16.mxu0 0
      %1263 = vmatpush1.bf16.xpose.msra.mxu0 0
      %1264 = vmatprep.subr.bf16.mxu0 0
      %1265 = vmatpush1.bf16.xpose.msra.mxu0 0
      %1266 = vmatprep.subr.bf16.mxu0 0
      %1267 = vmatpush1.bf16.xpose.msra.mxu0 0
      %1268 = vmatprep.subr.bf16.mxu0 0
      %1269 = vmatpush1.bf16.xpose.msra.mxu0 0
      %1270 = vmatprep.subr.bf16.mxu0 0
      %1271 = vmatpush1.bf16.xpose.msra.mxu0 0
      %1272 = vmatprep.subr.bf16.mxu0 0
      %1273 = vmatpush1.bf16.xpose.msra.mxu0 0
      %1274 = vmatprep.subr.bf16.mxu0 0
      %1275 = vmatpush1.bf16.xpose.msra.mxu0 0
      %1276 = vmatprep.subr.bf16.mxu0 0
      %1277 = vmatpush1.bf16.xpose.msra.mxu0 0
      %1278 = vmatprep.subr.bf16.mxu0 0
      %1279 = vmatpush1.bf16.xpose.msra.mxu0 0
      %1280 = vmatprep.mubr.bf16.mxu0 0
      %1281 = vmatmul.mubr.bf16.gmra.mrb[0].mxu0 %v1243
      %v1282 = vpop.f32.mrb[0].mxu0
      %v1283 = vadd.f32 %v1110, %v1282
      %v1284 = vpop.f32.mrb[0].mxu0
      %v1285 = vpop.f32.mrb[0].mxu0
      %v1286 = vadd.f32 %v1111, %v1285
      %v1287 = vpop.f32.mrb[0].mxu0
      %1288 = vdwg.mxu0
      %v1289 = vsel %vm1163, %v1283, -inf
      %1290 = vmax.xlane.f32.xlu0 %v1289
      %v1291 = vpop.xlane.xlu0 %1290
      %v1292 = vsel %vm1167, %v1286, -inf
      %1293 = vmax.xlane.f32.xlu0 %v1292
      %v1294 = vpop.xlane.xlu0 %1293
      %v1295 = vsub.f32 %v1283, %v1291
      %v1296 = vsub.f32 %v1286, %v1294
      %v1297 = vmul.f32 %v1295, 1.442695
      %v1298 = vpow.pop %v1297
      %v1299 = vmul.f32 %v1296, 1.442695
      %v1300 = vpow.pop %v1299
      %v1301 = vsel %vm1163, %v1298, 0.0
      %1302 = vadd.xlane.f32.xlu0 %v1301
      %v1303 = vpop.xlane.xlu0 %1302
      %v1304 = vsel %vm1167, %v1300, 0.0
      %1305 = vadd.xlane.f32.xlu0 %v1304
      %v1306 = vpop.xlane.xlu0 %1305
      %v1307 = vpack.c.bf16 %v1300, %v1298
      %1308 = vrot.lane.b32.xlu0 %v1109, 56
      %v1309 = vpop.permute.xlu0 %1308
      %v1311 = vsel %vm1163, %v1307, 0
      %v1314 = vsel %vm1189, %v1309, 0
      %1316 = vmatprep.subr.bf16.mxu0 0
      %1317 = vmatpush1.bf16.msra.mxu0 %v1314
      %1318 = vmatprep.subr.bf16.mxu0 0
      %1319 = vmatpush1.bf16.msra.mxu0 0
      %1320 = vmatprep.subr.bf16.mxu0 0
      %1321 = vmatpush1.bf16.msra.mxu0 0
      %1322 = vmatprep.subr.bf16.mxu0 0
      %1323 = vmatpush1.bf16.msra.mxu0 0
      %1324 = vmatprep.subr.bf16.mxu0 0
      %1325 = vmatpush1.bf16.msra.mxu0 0
      %1326 = vmatprep.subr.bf16.mxu0 0
      %1327 = vmatpush1.bf16.msra.mxu0 0
      %1328 = vmatprep.subr.bf16.mxu0 0
      %1329 = vmatpush1.bf16.msra.mxu0 0
      %1330 = vmatprep.subr.bf16.mxu0 0
      %1331 = vmatpush1.bf16.msra.mxu0 0
      %1332 = vmatprep.subr.bf16.mxu0 0
      %1333 = vmatpush1.bf16.msra.mxu0 0
      %1334 = vmatprep.subr.bf16.mxu0 0
      %1335 = vmatpush1.bf16.msra.mxu0 0
      %1336 = vmatprep.subr.bf16.mxu0 0
      %1337 = vmatpush1.bf16.msra.mxu0 0
      %1338 = vmatprep.subr.bf16.mxu0 0
      %1339 = vmatpush1.bf16.msra.mxu0 0
      %1340 = vmatprep.subr.bf16.mxu0 0
      %1341 = vmatpush1.bf16.msra.mxu0 0
      %1342 = vmatprep.subr.bf16.mxu0 0
      %1343 = vmatpush1.bf16.msra.mxu0 0
      %1344 = vmatprep.subr.bf16.mxu0 0
      %1345 = vmatpush1.bf16.msra.mxu0 0
      %1346 = vmatprep.subr.bf16.mxu0 0
      %1347 = vmatpush1.bf16.msra.mxu0 0
      %1348 = vmatprep.mubr.bf16.mxu0 0
      %1349 = vmatmul.mubr.bf16.gmra.mrb[0].mxu0 %v1311
      %v1350 = vpop.f32.mrb[0].mxu0
      %v1351 = vadd.f32 0.0, %v1350
      %v1352 = vpop.f32.mrb[0].mxu0
      %v1353 = vpop.f32.mrb[0].mxu0
      %v1354 = vadd.f32 0.0, %v1353
      %v1355 = vpop.f32.mrb[0].mxu0
      %1356 = vdwg.mxu0
      %v1357 = vrcp.pop %v1303
      %v1358 = vrcp.pop %v1306
      %v1359 = vmul.f32 %v1351, %v1357
      %v1360 = vmul.f32 %v1354, %v1358
      %1361 = vrot.lane.b32.xlu0 %v1109, 112
      %v1362 = vpop.permute.xlu0 %1361
      %1363 = vrot.lane.b32.xlu0 %v1109, 80
      %v1364 = vpop.permute.xlu0 %1363
      %v1366 = vsel %vm1115, %v1362, 0
      %v1369 = vsel %vm1115, %v1364, 0
      %1371 = vmatprep.subr.bf16.mxu0 0
      %1372 = vmatpush1.bf16.xpose.msra.mxu0 %v1369
      %1373 = vmatprep.subr.bf16.mxu0 0
      %1374 = vmatpush1.bf16.xpose.msra.mxu0 0
      %1375 = vmatprep.subr.bf16.mxu0 0
      %1376 = vmatpush1.bf16.xpose.msra.mxu0 0
      %1377 = vmatprep.subr.bf16.mxu0 0
      %1378 = vmatpush1.bf16.xpose.msra.mxu0 0
      %1379 = vmatprep.subr.bf16.mxu0 0
      %1380 = vmatpush1.bf16.xpose.msra.mxu0 0
      %1381 = vmatprep.subr.bf16.mxu0 0
      %1382 = vmatpush1.bf16.xpose.msra.mxu0 0
      %1383 = vmatprep.subr.bf16.mxu0 0
      %1384 = vmatpush1.bf16.xpose.msra.mxu0 0
      %1385 = vmatprep.subr.bf16.mxu0 0
      %1386 = vmatpush1.bf16.xpose.msra.mxu0 0
      %1387 = vmatprep.subr.bf16.mxu0 0
      %1388 = vmatpush1.bf16.xpose.msra.mxu0 0
      %1389 = vmatprep.subr.bf16.mxu0 0
      %1390 = vmatpush1.bf16.xpose.msra.mxu0 0
      %1391 = vmatprep.subr.bf16.mxu0 0
      %1392 = vmatpush1.bf16.xpose.msra.mxu0 0
      %1393 = vmatprep.subr.bf16.mxu0 0
      %1394 = vmatpush1.bf16.xpose.msra.mxu0 0
      %1395 = vmatprep.subr.bf16.mxu0 0
      %1396 = vmatpush1.bf16.xpose.msra.mxu0 0
      %1397 = vmatprep.subr.bf16.mxu0 0
      %1398 = vmatpush1.bf16.xpose.msra.mxu0 0
      %1399 = vmatprep.subr.bf16.mxu0 0
      %1400 = vmatpush1.bf16.xpose.msra.mxu0 0
      %1401 = vmatprep.subr.bf16.mxu0 0
      %1402 = vmatpush1.bf16.xpose.msra.mxu0 0
      %1403 = vmatprep.mubr.bf16.mxu0 0
      %1404 = vmatmul.mubr.bf16.gmra.mrb[0].mxu0 %v1366
      %v1405 = vpop.f32.mrb[0].mxu0
      %v1406 = vadd.f32 %v1110, %v1405
      %v1407 = vpop.f32.mrb[0].mxu0
      %v1408 = vpop.f32.mrb[0].mxu0
      %v1409 = vadd.f32 %v1111, %v1408
      %v1410 = vpop.f32.mrb[0].mxu0
      %1411 = vdwg.mxu0
      %v1412 = vsel %vm1163, %v1406, -inf
      %1413 = vmax.xlane.f32.xlu0 %v1412
      %v1414 = vpop.xlane.xlu0 %1413
      %v1415 = vsel %vm1167, %v1409, -inf
      %1416 = vmax.xlane.f32.xlu0 %v1415
      %v1417 = vpop.xlane.xlu0 %1416
      %v1418 = vsub.f32 %v1406, %v1414
      %v1419 = vsub.f32 %v1409, %v1417
      %v1420 = vmul.f32 %v1418, 1.442695
      %v1421 = vpow.pop %v1420
      %v1422 = vmul.f32 %v1419, 1.442695
      %v1423 = vpow.pop %v1422
      %v1424 = vsel %vm1163, %v1421, 0.0
      %1425 = vadd.xlane.f32.xlu0 %v1424
      %v1426 = vpop.xlane.xlu0 %1425
      %v1427 = vsel %vm1167, %v1423, 0.0
      %1428 = vadd.xlane.f32.xlu0 %v1427
      %v1429 = vpop.xlane.xlu0 %1428
      %v1430 = vpack.c.bf16 %v1423, %v1421
      %1431 = vrot.lane.b32.xlu0 %v1109, 48
      %v1432 = vpop.permute.xlu0 %1431
      %v1434 = vsel %vm1163, %v1430, 0
      %v1437 = vsel %vm1189, %v1432, 0
      %1439 = vmatprep.subr.bf16.mxu0 0
      %1440 = vmatpush1.bf16.msra.mxu0 %v1437
      %1441 = vmatprep.subr.bf16.mxu0 0
      %1442 = vmatpush1.bf16.msra.mxu0 0
      %1443 = vmatprep.subr.bf16.mxu0 0
      %1444 = vmatpush1.bf16.msra.mxu0 0
      %1445 = vmatprep.subr.bf16.mxu0 0
      %1446 = vmatpush1.bf16.msra.mxu0 0
      %1447 = vmatprep.subr.bf16.mxu0 0
      %1448 = vmatpush1.bf16.msra.mxu0 0
      %1449 = vmatprep.subr.bf16.mxu0 0
      %1450 = vmatpush1.bf16.msra.mxu0 0
      %1451 = vmatprep.subr.bf16.mxu0 0
      %1452 = vmatpush1.bf16.msra.mxu0 0
      %1453 = vmatprep.subr.bf16.mxu0 0
      %1454 = vmatpush1.bf16.msra.mxu0 0
      %1455 = vmatprep.subr.bf16.mxu0 0
      %1456 = vmatpush1.bf16.msra.mxu0 0
      %1457 = vmatprep.subr.bf16.mxu0 0
      %1458 = vmatpush1.bf16.msra.mxu0 0
      %1459 = vmatprep.subr.bf16.mxu0 0
      %1460 = vmatpush1.bf16.msra.mxu0 0
      %1461 = vmatprep.subr.bf16.mxu0 0
      %1462 = vmatpush1.bf16.msra.mxu0 0
      %1463 = vmatprep.subr.bf16.mxu0 0
      %1464 = vmatpush1.bf16.msra.mxu0 0
      %1465 = vmatprep.subr.bf16.mxu0 0
      %1466 = vmatpush1.bf16.msra.mxu0 0
      %1467 = vmatprep.subr.bf16.mxu0 0
      %1468 = vmatpush1.bf16.msra.mxu0 0
      %1469 = vmatprep.subr.bf16.mxu0 0
      %1470 = vmatpush1.bf16.msra.mxu0 0
      %1471 = vmatprep.mubr.bf16.mxu0 0
      %1472 = vmatmul.mubr.bf16.gmra.mrb[0].mxu0 %v1434
      %v1473 = vpop.f32.mrb[0].mxu0
      %v1474 = vadd.f32 0.0, %v1473
      %v1475 = vpop.f32.mrb[0].mxu0
      %v1476 = vpop.f32.mrb[0].mxu0
      %v1477 = vadd.f32 0.0, %v1476
      %v1478 = vpop.f32.mrb[0].mxu0
      %1479 = vdwg.mxu0
      %v1480 = vrcp.pop %v1426
      %v1481 = vrcp.pop %v1429
      %v1482 = vmul.f32 %v1474, %v1480
      %v1483 = vmul.f32 %v1477, %v1481
      %1484 = vrot.lane.b32.xlu0 %v1109, 104
      %v1485 = vpop.permute.xlu0 %1484
      %1486 = vrot.lane.b32.xlu0 %v1109, 72
      %v1487 = vpop.permute.xlu0 %1486
      %v1489 = vsel %vm1115, %v1485, 0
      %v1492 = vsel %vm1115, %v1487, 0
      %1494 = vmatprep.subr.bf16.mxu0 0
      %1495 = vmatpush1.bf16.xpose.msra.mxu0 %v1492
      %1496 = vmatprep.subr.bf16.mxu0 0
      %1497 = vmatpush1.bf16.xpose.msra.mxu0 0
      %1498 = vmatprep.subr.bf16.mxu0 0
      %1499 = vmatpush1.bf16.xpose.msra.mxu0 0
      %1500 = vmatprep.subr.bf16.mxu0 0
      %1501 = vmatpush1.bf16.xpose.msra.mxu0 0
      %1502 = vmatprep.subr.bf16.mxu0 0
      %1503 = vmatpush1.bf16.xpose.msra.mxu0 0
      %1504 = vmatprep.subr.bf16.mxu0 0
      %1505 = vmatpush1.bf16.xpose.msra.mxu0 0
      %1506 = vmatprep.subr.bf16.mxu0 0
      %1507 = vmatpush1.bf16.xpose.msra.mxu0 0
      %1508 = vmatprep.subr.bf16.mxu0 0
      %1509 = vmatpush1.bf16.xpose.msra.mxu0 0
      %1510 = vmatprep.subr.bf16.mxu0 0
      %1511 = vmatpush1.bf16.xpose.msra.mxu0 0
      %1512 = vmatprep.subr.bf16.mxu0 0
      %1513 = vmatpush1.bf16.xpose.msra.mxu0 0
      %1514 = vmatprep.subr.bf16.mxu0 0
      %1515 = vmatpush1.bf16.xpose.msra.mxu0 0
      %1516 = vmatprep.subr.bf16.mxu0 0
      %1517 = vmatpush1.bf16.xpose.msra.mxu0 0
      %1518 = vmatprep.subr.bf16.mxu0 0
      %1519 = vmatpush1.bf16.xpose.msra.mxu0 0
      %1520 = vmatprep.subr.bf16.mxu0 0
      %1521 = vmatpush1.bf16.xpose.msra.mxu0 0
      %1522 = vmatprep.subr.bf16.mxu0 0
      %1523 = vmatpush1.bf16.xpose.msra.mxu0 0
      %1524 = vmatprep.subr.bf16.mxu0 0
      %1525 = vmatpush1.bf16.xpose.msra.mxu0 0
      %1526 = vmatprep.mubr.bf16.mxu0 0
      %1527 = vmatmul.mubr.bf16.gmra.mrb[0].mxu0 %v1489
      %v1528 = vpop.f32.mrb[0].mxu0
      %v1529 = vadd.f32 %v1110, %v1528
      %v1530 = vpop.f32.mrb[0].mxu0
      %v1531 = vpop.f32.mrb[0].mxu0
      %v1532 = vadd.f32 %v1111, %v1531
      %v1533 = vpop.f32.mrb[0].mxu0
      %1534 = vdwg.mxu0
      %v1535 = vsel %vm1163, %v1529, -inf
      %1536 = vmax.xlane.f32.xlu0 %v1535
      %v1537 = vpop.xlane.xlu0 %1536
      %v1538 = vsel %vm1167, %v1532, -inf
      %1539 = vmax.xlane.f32.xlu0 %v1538
      %v1540 = vpop.xlane.xlu0 %1539
      %v1541 = vsub.f32 %v1529, %v1537
      %v1542 = vsub.f32 %v1532, %v1540
      %v1543 = vmul.f32 %v1541, 1.442695
      %v1544 = vpow.pop %v1543
      %v1545 = vmul.f32 %v1542, 1.442695
      %v1546 = vpow.pop %v1545
      %v1547 = vsel %vm1163, %v1544, 0.0
      %1548 = vadd.xlane.f32.xlu0 %v1547
      %v1549 = vpop.xlane.xlu0 %1548
      %v1550 = vsel %vm1167, %v1546, 0.0
      %1551 = vadd.xlane.f32.xlu0 %v1550
      %v1552 = vpop.xlane.xlu0 %1551
      %v1553 = vpack.c.bf16 %v1546, %v1544
      %1554 = vrot.lane.b32.xlu0 %v1109, 40
      %v1555 = vpop.permute.xlu0 %1554
      %v1557 = vsel %vm1163, %v1553, 0
      %v1560 = vsel %vm1189, %v1555, 0
      %1562 = vmatprep.subr.bf16.mxu0 0
      %1563 = vmatpush1.bf16.msra.mxu0 %v1560
      %1564 = vmatprep.subr.bf16.mxu0 0
      %1565 = vmatpush1.bf16.msra.mxu0 0
      %1566 = vmatprep.subr.bf16.mxu0 0
      %1567 = vmatpush1.bf16.msra.mxu0 0
      %1568 = vmatprep.subr.bf16.mxu0 0
      %1569 = vmatpush1.bf16.msra.mxu0 0
      %1570 = vmatprep.subr.bf16.mxu0 0
      %1571 = vmatpush1.bf16.msra.mxu0 0
      %1572 = vmatprep.subr.bf16.mxu0 0
      %1573 = vmatpush1.bf16.msra.mxu0 0
      %1574 = vmatprep.subr.bf16.mxu0 0
      %1575 = vmatpush1.bf16.msra.mxu0 0
      %1576 = vmatprep.subr.bf16.mxu0 0
      %1577 = vmatpush1.bf16.msra.mxu0 0
      %1578 = vmatprep.subr.bf16.mxu0 0
      %1579 = vmatpush1.bf16.msra.mxu0 0
      %1580 = vmatprep.subr.bf16.mxu0 0
      %1581 = vmatpush1.bf16.msra.mxu0 0
      %1582 = vmatprep.subr.bf16.mxu0 0
      %1583 = vmatpush1.bf16.msra.mxu0 0
      %1584 = vmatprep.subr.bf16.mxu0 0
      %1585 = vmatpush1.bf16.msra.mxu0 0
      %1586 = vmatprep.subr.bf16.mxu0 0
      %1587 = vmatpush1.bf16.msra.mxu0 0
      %1588 = vmatprep.subr.bf16.mxu0 0
      %1589 = vmatpush1.bf16.msra.mxu0 0
      %1590 = vmatprep.subr.bf16.mxu0 0
      %1591 = vmatpush1.bf16.msra.mxu0 0
      %1592 = vmatprep.subr.bf16.mxu0 0
      %1593 = vmatpush1.bf16.msra.mxu0 0
      %1594 = vmatprep.mubr.bf16.mxu0 0
      %1595 = vmatmul.mubr.bf16.gmra.mrb[0].mxu0 %v1557
      %v1596 = vpop.f32.mrb[0].mxu0
      %v1597 = vadd.f32 0.0, %v1596
      %v1598 = vpop.f32.mrb[0].mxu0
      %v1599 = vpop.f32.mrb[0].mxu0
      %v1600 = vadd.f32 0.0, %v1599
      %v1601 = vpop.f32.mrb[0].mxu0
      %1602 = vdwg.mxu0
      %v1603 = vrcp.pop %v1549
      %v1604 = vrcp.pop %v1552
      %v1605 = vmul.f32 %v1597, %v1603
      %v1606 = vmul.f32 %v1600, %v1604
      %1609 = vrot.lane.b32.xlu0 %v1359, 8
      %v1610 = vpop.permute.xlu0 %1609
      %1611 = vrot.lane.b32.xlu0 %v1360, 8
      %v1612 = vpop.permute.xlu0 %1611
      %1617 = vrot.lane.b32.xlu0 %v1482, 16
      %v1618 = vpop.permute.xlu0 %1617
      %1619 = vrot.lane.b32.xlu0 %v1483, 16
      %v1620 = vpop.permute.xlu0 %1619
      %1625 = vrot.lane.b32.xlu0 %v1605, 24
      %v1626 = vpop.permute.xlu0 %1625
      %1627 = vrot.lane.b32.xlu0 %v1606, 24
      %v1628 = vpop.permute.xlu0 %1627
      %v1631 = vsel %vm1115, %v1236, %v1610
      %v1632 = vsel %vm1115, %v1237, %v1612
      %vm1633 = vcmask 130048
      %v1634 = vsel %vm1633, %v1631, %v1618
      %v1635 = vsel %vm1633, %v1632, %v1620
      %vm1636 = vcmask 195584
      %v1637 = vsel %vm1636, %v1634, %v1626
      %v1638 = vsel %vm1636, %v1635, %v1628
      %v1639 = vpack.c.bf16 %v1638, %v1637
      %v1640 = vld [vmem:[%s769] sm:$0xf]
      %v1641 = vld [vmem:[%s769 + $0x4] sm:$0xf]
      %v1642 = vld [vmem:[%s769 + $0x8] sm:$0xf]
      %v1643 = vld [vmem:[%s769 + $0xc] sm:$0xf]
      %v1644 = vld [vmem:[%s772] sm:$0x1]
      %v1646 = vlaneseq
      %v1647 = vshrl.u32 %v1646, 7
      %v1648 = vsub.s32 0, %v1647
      %v1649 = vrot.slane %v1644, %v1648
      %v1655 = vunpack.c.l.b16 %v1640
      %v1656 = vunpack.c.l.b16 %v1641
      %v1657 = vunpack.c.l.b16 %v1642
      %v1658 = vunpack.c.l.b16 %v1643
      %v1659 = vpack.c.b16 %v1656, %v1655
      %v1660 = vpack.c.b16 %v1658, %v1657
      %v1664 = vsel %vm996, %v1639, 0
      %1666 = vmatprep.subr.bf16.mxu0 0
      %1667 = vmatpush1.bf16.msra.mxu0 %v1659
      %1668 = vmatprep.subr.bf16.mxu0 0
      %1669 = vmatpush1.bf16.msra.mxu0 %v1660
      %1670 = vmatprep.subr.bf16.mxu0 0
      %1671 = vmatpush1.bf16.msra.mxu0 0
      %1672 = vmatprep.subr.bf16.mxu0 0
      %1673 = vmatpush1.bf16.msra.mxu0 0
      %1674 = vmatprep.subr.bf16.mxu0 0
      %1675 = vmatpush1.bf16.msra.mxu0 0
      %1676 = vmatprep.subr.bf16.mxu0 0
      %1677 = vmatpush1.bf16.msra.mxu0 0
      %1678 = vmatprep.subr.bf16.mxu0 0
      %1679 = vmatpush1.bf16.msra.mxu0 0
      %1680 = vmatprep.subr.bf16.mxu0 0
      %1681 = vmatpush1.bf16.msra.mxu0 0
      %1682 = vmatprep.subr.bf16.mxu0 0
      %1683 = vmatpush1.bf16.msra.mxu0 0
      %1684 = vmatprep.subr.bf16.mxu0 0
      %1685 = vmatpush1.bf16.msra.mxu0 0
      %1686 = vmatprep.subr.bf16.mxu0 0
      %1687 = vmatpush1.bf16.msra.mxu0 0
      %1688 = vmatprep.subr.bf16.mxu0 0
      %1689 = vmatpush1.bf16.msra.mxu0 0
      %1690 = vmatprep.subr.bf16.mxu0 0
      %1691 = vmatpush1.bf16.msra.mxu0 0
      %1692 = vmatprep.subr.bf16.mxu0 0
      %1693 = vmatpush1.bf16.msra.mxu0 0
      %1694 = vmatprep.subr.bf16.mxu0 0
      %1695 = vmatpush1.bf16.msra.mxu0 0
      %1696 = vmatprep.subr.bf16.mxu0 0
      %1697 = vmatpush1.bf16.msra.mxu0 0
      %1698 = vmatprep.mubr.bf16.mxu0 0
      %1699 = vmatmul.mubr.bf16.gmra.mrb[0].mxu0 %v1664
      %v1700 = vpop.f32.mrb[0].mxu0
      %v1701 = vadd.f32 %v1649, %v1700
      %v1702 = vpop.f32.mrb[0].mxu0
      %v1703 = vpop.f32.mrb[0].mxu0
      %v1704 = vadd.f32 %v1649, %v1703
      %v1705 = vpop.f32.mrb[0].mxu0
      %1706 = vdwg.mxu0
      %v1707 = vadd.f32 %v992, %v1701
      %v1708 = vadd.f32 %v993, %v1704
      %v1709 = vld [vmem:[%s775] sm:$0x1]
      %v1710 = vld [vmem:[%s778] sm:$0x1]
      %v1711 = vsel %vm996, %v1707, 0.0
      %1712 = vadd.xlane.f32.xlu0 %v1711
      %v1713 = vpop.xlane.xlu0 %1712
      %v1714 = vsel %vm1000, %v1708, 0.0
      %1715 = vadd.xlane.f32.xlu0 %v1714
      %v1716 = vpop.xlane.xlu0 %1715
      %v1717 = vmul.f32 %v1713, %v1004
      %v1718 = vmul.f32 %v1716, %v1004
      %v1719 = vsub.f32 %v1707, %v1717
      %v1720 = vsub.f32 %v1708, %v1718
      %v1721 = vmul.f32 %v1719, %v1719
      %v1722 = vmul.f32 %v1720, %v1720
      %v1723 = vsel %vm996, %v1721, 0.0
      %1724 = vadd.xlane.f32.xlu0 %v1723
      %v1725 = vpop.xlane.xlu0 %1724
      %v1726 = vsel %vm1000, %v1722, 0.0
      %1727 = vadd.xlane.f32.xlu0 %v1726
      %v1728 = vpop.xlane.xlu0 %1727
      %v1729 = vmul.f32 %v1725, %v1004
      %v1730 = vmul.f32 %v1728, %v1004
      %v1731 = vadd.f32 %v1729, 1e-06
      %v1732 = vadd.f32 %v1730, 1e-06
      %v1733 = vrsqrt.pop %v1731
      %v1734 = vrsqrt.pop %v1732
      %v1735 = vmul.f32 %v1719, %v1733
      %v1736 = vmul.f32 %v1720, %v1734
      %v1738 = vlaneseq
      %v1739 = vshrl.u32 %v1738, 7
      %v1740 = vsub.s32 0, %v1739
      %v1741 = vrot.slane %v1709, %v1740
      %v1743 = vmul.f32 %v1735, %v1741
      %v1744 = vmul.f32 %v1736, %v1741
      %v1746 = vlaneseq
      %v1747 = vshrl.u32 %v1746, 7
      %v1748 = vsub.s32 0, %v1747
      %v1749 = vrot.slane %v1710, %v1748
      %v1751 = vadd.f32 %v1743, %v1749
      %v1752 = vadd.f32 %v1744, %v1749
      %v1753 = vpack.c.bf16 %v1752, %v1751
      %v1754 = vld [vmem:[%s783] sm:$0xf]
      %v1755 = vld [vmem:[%s783 + $0x4] sm:$0xf]
      %v1756 = vld [vmem:[%s783 + $0x8] sm:$0xf]
      %v1757 = vld [vmem:[%s783 + $0xc] sm:$0xf]
      %v1758 = vld [vmem:[%s786] sm:$0x1]
      %v1760 = vlaneseq
      %v1761 = vshrl.u32 %v1760, 7
      %v1762 = vsub.s32 0, %v1761
      %v1763 = vrot.slane %v1758, %v1762
      %v1769 = vunpack.c.l.b16 %v1754
      %v1770 = vunpack.c.l.b16 %v1755
      %v1771 = vunpack.c.l.b16 %v1756
      %v1772 = vunpack.c.l.b16 %v1757
      %v1773 = vpack.c.b16 %v1770, %v1769
      %v1774 = vpack.c.b16 %v1772, %v1771
      %v1778 = vsel %vm996, %v1753, 0
      %1780 = vmatprep.subr.bf16.mxu0 0
      %1781 = vmatpush1.bf16.msra.mxu0 %v1773
      %1782 = vmatprep.subr.bf16.mxu0 0
      %1783 = vmatpush1.bf16.msra.mxu0 %v1774
      %1784 = vmatprep.subr.bf16.mxu0 0
      %1785 = vmatpush1.bf16.msra.mxu0 0
      %1786 = vmatprep.subr.bf16.mxu0 0
      %1787 = vmatpush1.bf16.msra.mxu0 0
      %1788 = vmatprep.subr.bf16.mxu0 0
      %1789 = vmatpush1.bf16.msra.mxu0 0
      %1790 = vmatprep.subr.bf16.mxu0 0
      %1791 = vmatpush1.bf16.msra.mxu0 0
      %1792 = vmatprep.subr.bf16.mxu0 0
      %1793 = vmatpush1.bf16.msra.mxu0 0
      %1794 = vmatprep.subr.bf16.mxu0 0
      %1795 = vmatpush1.bf16.msra.mxu0 0
      %1796 = vmatprep.subr.bf16.mxu0 0
      %1797 = vmatpush1.bf16.msra.mxu0 0
      %1798 = vmatprep.subr.bf16.mxu0 0
      %1799 = vmatpush1.bf16.msra.mxu0 0
      %1800 = vmatprep.subr.bf16.mxu0 0
      %1801 = vmatpush1.bf16.msra.mxu0 0
      %1802 = vmatprep.subr.bf16.mxu0 0
      %1803 = vmatpush1.bf16.msra.mxu0 0
      %1804 = vmatprep.subr.bf16.mxu0 0
      %1805 = vmatpush1.bf16.msra.mxu0 0
      %1806 = vmatprep.subr.bf16.mxu0 0
      %1807 = vmatpush1.bf16.msra.mxu0 0
      %1808 = vmatprep.subr.bf16.mxu0 0
      %1809 = vmatpush1.bf16.msra.mxu0 0
      %1810 = vmatprep.subr.bf16.mxu0 0
      %1811 = vmatpush1.bf16.msra.mxu0 0
      %1812 = vmatprep.mubr.bf16.mxu0 0
      %1813 = vmatmul.mubr.bf16.gmra.mrb[0].mxu0 %v1778
      %v1814 = vpop.f32.mrb[0].mxu0
      %v1815 = vadd.f32 %v1763, %v1814
      %v1816 = vpop.f32.mrb[0].mxu0
      %v1817 = vpop.f32.mrb[0].mxu0
      %v1818 = vadd.f32 %v1763, %v1817
      %v1819 = vpop.f32.mrb[0].mxu0
      %1820 = vdwg.mxu0
      %v1821 = vmul.f32 %v1815, 0.5
      %v1822 = vmul.f32 %v1818, 0.5
      %v1823 = vmul.f32 %v1815, 0.70710677
      %v1824 = vmul.f32 %v1818, 0.70710677
      %v1825 = verf.f32.pop %v1823
      %v1826 = verf.f32.pop %v1824
      %v1827 = vadd.f32 %v1825, 1.0
      %v1828 = vadd.f32 %v1826, 1.0
      %v1829 = vmul.f32 %v1821, %v1827
      %v1830 = vmul.f32 %v1822, %v1828
      %v1831 = vpack.c.bf16 %v1830, %v1829
      %v1832 = vld [vmem:[%s791] sm:$0xf]
      %v1833 = vld [vmem:[%s791 + $0x4] sm:$0xf]
      %v1834 = vld [vmem:[%s791 + $0x8] sm:$0xf]
      %v1835 = vld [vmem:[%s791 + $0xc] sm:$0xf]
      %v1836 = vld [vmem:[%s791 + $0x10] sm:$0xf]
      %v1837 = vld [vmem:[%s791 + $0x14] sm:$0xf]
      %v1838 = vld [vmem:[%s791 + $0x18] sm:$0xf]
      %v1839 = vld [vmem:[%s791 + $0x1c] sm:$0xf]
      %v1840 = vld [vmem:[%s791 + $0x20] sm:$0xf]
      %v1841 = vld [vmem:[%s791 + $0x24] sm:$0xf]
      %v1842 = vld [vmem:[%s791 + $0x28] sm:$0xf]
      %v1843 = vld [vmem:[%s791 + $0x2c] sm:$0xf]
      %v1844 = vld [vmem:[%s791 + $0x30] sm:$0xf]
      %v1845 = vld [vmem:[%s791 + $0x34] sm:$0xf]
      %v1846 = vld [vmem:[%s791 + $0x38] sm:$0xf]
      %v1847 = vld [vmem:[%s791 + $0x3c] sm:$0xf]
      %v1848 = vld [vmem:[%s794] sm:$0x1]
      %v1850 = vlaneseq
      %v1851 = vshrl.u32 %v1850, 7
      %v1852 = vsub.s32 0, %v1851
      %v1853 = vrot.slane %v1848, %v1852
      %v1871 = vunpack.c.l.b16 %v1832
      %v1872 = vunpack.c.l.b16 %v1833
      %v1873 = vunpack.c.l.b16 %v1834
      %v1874 = vunpack.c.l.b16 %v1835
      %v1875 = vunpack.c.l.b16 %v1836
      %v1876 = vunpack.c.l.b16 %v1837
      %v1877 = vunpack.c.l.b16 %v1838
      %v1878 = vunpack.c.l.b16 %v1839
      %v1879 = vunpack.c.l.b16 %v1840
      %v1880 = vunpack.c.l.b16 %v1841
      %v1881 = vunpack.c.l.b16 %v1842
      %v1882 = vunpack.c.l.b16 %v1843
      %v1883 = vunpack.c.l.b16 %v1844
      %v1884 = vunpack.c.l.b16 %v1845
      %v1885 = vunpack.c.l.b16 %v1846
      %v1886 = vunpack.c.l.b16 %v1847
      %v1887 = vpack.c.b16 %v1872, %v1871
      %v1888 = vpack.c.b16 %v1874, %v1873
      %v1889 = vpack.c.b16 %v1876, %v1875
      %v1890 = vpack.c.b16 %v1878, %v1877
      %v1891 = vpack.c.b16 %v1880, %v1879
      %v1892 = vpack.c.b16 %v1882, %v1881
      %v1893 = vpack.c.b16 %v1884, %v1883
      %v1894 = vpack.c.b16 %v1886, %v1885
      %1903 = vmatprep.subr.bf16.mxu0 0
      %1904 = vmatpush1.bf16.msra.mxu0 %v1887
      %1905 = vmatprep.subr.bf16.mxu0 0
      %1906 = vmatpush1.bf16.msra.mxu0 %v1888
      %1907 = vmatprep.subr.bf16.mxu0 0
      %1908 = vmatpush1.bf16.msra.mxu0 %v1889
      %1909 = vmatprep.subr.bf16.mxu0 0
      %1910 = vmatpush1.bf16.msra.mxu0 %v1890
      %1911 = vmatprep.subr.bf16.mxu0 0
      %1912 = vmatpush1.bf16.msra.mxu0 %v1891
      %1913 = vmatprep.subr.bf16.mxu0 0
      %1914 = vmatpush1.bf16.msra.mxu0 %v1892
      %1915 = vmatprep.subr.bf16.mxu0 0
      %1916 = vmatpush1.bf16.msra.mxu0 %v1893
      %1917 = vmatprep.subr.bf16.mxu0 0
      %1918 = vmatpush1.bf16.msra.mxu0 %v1894
      %1919 = vmatprep.subr.bf16.mxu0 0
      %1920 = vmatpush1.bf16.msra.mxu0 0
      %1921 = vmatprep.subr.bf16.mxu0 0
      %1922 = vmatpush1.bf16.msra.mxu0 0
      %1923 = vmatprep.subr.bf16.mxu0 0
      %1924 = vmatpush1.bf16.msra.mxu0 0
      %1925 = vmatprep.subr.bf16.mxu0 0
      %1926 = vmatpush1.bf16.msra.mxu0 0
      %1927 = vmatprep.subr.bf16.mxu0 0
      %1928 = vmatpush1.bf16.msra.mxu0 0
      %1929 = vmatprep.subr.bf16.mxu0 0
      %1930 = vmatpush1.bf16.msra.mxu0 0
      %1931 = vmatprep.subr.bf16.mxu0 0
      %1932 = vmatpush1.bf16.msra.mxu0 0
      %1933 = vmatprep.subr.bf16.mxu0 0
      %1934 = vmatpush1.bf16.msra.mxu0 0
      %1935 = vmatprep.mubr.bf16.mxu0 0
      %1936 = vmatmul.mubr.bf16.gmra.mrb[0].mxu0 %v1831
      %v1937 = vpop.f32.mrb[0].mxu0
      %v1938 = vadd.f32 %v1853, %v1937
      %v1939 = vpop.f32.mrb[0].mxu0
      %v1940 = vpop.f32.mrb[0].mxu0
      %v1941 = vadd.f32 %v1853, %v1940
      %v1942 = vpop.f32.mrb[0].mxu0
      %1943 = vdwg.mxu0
      %v1944 = vadd.f32 %v1707, %v1938
      %v1945 = vadd.f32 %v1708, %v1941
      %1946 = vst.msk [vmem:[#allocation2] sm:$0xff] %vm996, %v1944
      %1947 = vst.msk [vmem:[#allocation2 + $0x8] sm:$0x3] %vm1000, %v1945
      %p1948 = scmp.eq.s32.totalorder %s34, 1
      // Predicated region
      $region97: #{vision_transformer_backbone.1} parent=91 // pred_check
        %p1949 = pneg %p1948
      $region98: #{vision_transformer_backbone.1} parent=91 // pred_check_branch
        %1951 = sbr.rel (%p1949) target = $region100
      $region99: #{vision_transformer_backbone.1} parent=91 // pred_region
        %v1952 = vld [vmem:[%s16] sm:$0x1]
        %v1953 = vld [vmem:[%s17] sm:$0x1]
        %v1954 = vsel %vm996, %v1944, 0.0
        %1955 = vadd.xlane.f32.xlu0 %v1954
        %v1956 = vpop.xlane.xlu0 %1955
        %v1957 = vsel %vm1000, %v1945, 0.0
        %1958 = vadd.xlane.f32.xlu0 %v1957
        %v1959 = vpop.xlane.xlu0 %1958
        %v1960 = vmul.f32 %v1956, %v1004
        %v1961 = vmul.f32 %v1959, %v1004
        %v1962 = vsub.f32 %v1944, %v1960
        %v1963 = vsub.f32 %v1945, %v1961
        %v1964 = vmul.f32 %v1962, %v1962
        %v1965 = vmul.f32 %v1963, %v1963
        %v1966 = vsel %vm996, %v1964, 0.0
        %1967 = vadd.xlane.f32.xlu0 %v1966
        %v1968 = vpop.xlane.xlu0 %1967
        %v1969 = vsel %vm1000, %v1965, 0.0
        %1970 = vadd.xlane.f32.xlu0 %v1969
        %v1971 = vpop.xlane.xlu0 %1970
        %v1972 = vmul.f32 %v1968, %v1004
        %v1973 = vmul.f32 %v1971, %v1004
        %v1974 = vadd.f32 %v1972, 1e-06
        %v1975 = vadd.f32 %v1973, 1e-06
        %v1976 = vrsqrt.pop %v1974
        %v1977 = vrsqrt.pop %v1975
        %v1978 = vmul.f32 %v1962, %v1976
        %v1979 = vmul.f32 %v1963, %v1977
        %v1981 = vlaneseq
        %v1982 = vshrl.u32 %v1981, 7
        %v1983 = vsub.s32 0, %v1982
        %v1984 = vrot.slane %v1952, %v1983
        %v1986 = vmul.f32 %v1978, %v1984
        %v1987 = vmul.f32 %v1979, %v1984
        %v1989 = vlaneseq
        %v1990 = vshrl.u32 %v1989, 7
        %v1991 = vsub.s32 0, %v1990
        %v1992 = vrot.slane %v1953, %v1991
        %v1994 = vadd.f32 %v1986, %v1992
        %v1995 = vadd.f32 %v1987, %v1992
        %1996 = vst.msk [vmem:[%s799] sm:$0xff] %vm996, %v1994
        %1997 = vst.msk [vmem:[%s799 + $0x8] sm:$0x3] %vm1000, %v1995
      $region100: #{vision_transformer_backbone.1} parent=91 // pred_fallthru
        _
      %p1998 = scmp.lt.s32.totalorder %s33, 1
      %s1999 = scalar_select %p1998, %s33, 1
      %s2000 = smul.addr %s1999, 2
      %s2001 = smul.addr %s2000, 8
      %s2002 = scalar_lea.vmem %s18, %s2001
      // Predicated region
      $region101: #{vision_transformer_backbone.1} parent=91 // pred_check
        %p2003 = pneg %p507
      $region102: #{vision_transformer_backbone.1} parent=91 // pred_check_branch
        %2005 = sbr.rel (%p2003) target = $region104
      $region103: #{vision_transformer_backbone.1} parent=91 // pred_region
        _
      $region104: #{vision_transformer_backbone.1} parent=91 // pred_fallthru
        _
    $region92: #{vision_transformer_backbone.1} parent=5 // pred_fallthru
      _
    %p2006 = scmp.le.s32.totalorder 2, %s24
    // Predicated region
    $region105: #{vision_transformer_backbone.1} parent=5 // pred_check
      %p2007 = pneg %p2006
    $region106: #{vision_transformer_backbone.1} parent=5 // pred_check_branch
      %2009 = sbr.rel (%p2007) target = $region108
    $region107: #{vision_transformer_backbone.1} parent=5 // pred_region
      %s2010 = ssub.s32 %s24, 2
      // Predicated region
      $region109: #{vision_transformer_backbone.1} parent=107 // pred_check
        %p2011 = pneg %p513
      $region110: #{vision_transformer_backbone.1} parent=107 // pred_check_branch
        %2013 = sbr.rel (%p2011) target = $region112
      $region111: #{vision_transformer_backbone.1} parent=107 // pred_region
        %p2014 = scmp.lt.s32.totalorder %s35, 1
        %s2015 = scalar_select %p2014, %s35, 1
        %s2016 = smul.addr %s2015, 2
        %s2017 = smul.addr %s2016, 8
        %s2018 = scalar_lea.vmem %s18, %s2017
      $region112: #{vision_transformer_backbone.1} parent=107 // pred_fallthru
        _
    $region108: #{vision_transformer_backbone.1} parent=5 // pred_fallthru
      _
  $region6: #{vision_transformer_backbone.1} parent=0 // loop_footer
    %s28 = sadd.s32 1, %s24
  $region7: #{vision_transformer_backbone.1} parent=0 // loop_footer_branch
    %23 = sbr.rel target = $region3
  $region8: #{vision_transformer_backbone.1} parent=0 // loop_exit
    _

</llo_original>
